<compile_context>
chip_gen: v5e
topology: v5e:2x2
jax: 0.10.0
libtpu: 0.0.40
codegen_flags: <defaults>
</compile_context>

<pallas_src>
import functools
from operator import itemgetter

import numpy as np
import jax
import jax.numpy as jnp
from jax import lax
from jax.experimental import pallas as pl
from jax.experimental.pallas import tpu as pltpu


# ---------------------------------------------------------------------------
# Helpers identical to the PyTorch source
# ---------------------------------------------------------------------------
def map_el_ind(arr, ind):
    return list(map(itemgetter(ind), arr))


def sort_and_return_indices(arr):
    indices = [ind for ind in range(len(arr))]
    arr = zip(arr, indices)
    arr = sorted(arr)
    return (map_el_ind(arr, 0), map_el_ind(arr, 1))


def calculate_permutations(num_dimensions, emb_dim):
    total_dimensions = num_dimensions + 2
    emb_dim = emb_dim if emb_dim > 0 else emb_dim + total_dimensions
    axial_dims = [ind for ind in range(1, total_dimensions) if ind != emb_dim]
    permutations = []
    for axial_dim in axial_dims:
        last_two_dims = [axial_dim, emb_dim]
        dims_rest = set(range(0, total_dimensions)) - set(last_two_dims)
        permutation = [*dims_rest, *last_two_dims]
        permutations.append(permutation)
    return permutations


# ---------------------------------------------------------------------------
# Pallas kernel: axial self-attention directly on the NCHW tensor.
#   token_axis == 2 -> attend along H (batch over B, W)   [perm (0, 3, 2, 1)]
#   token_axis == 3 -> attend along W (batch over B, H)   [perm (0, 2, 3, 1)]
# ---------------------------------------------------------------------------
def _axial_attention_nchw_kernel(x_ref, wq_ref, wk_ref, wv_ref, wot_ref, bo_ref,
                                 o_ref, *, token_axis, heads, scale):
    B, C, H, W = x_ref.shape
    he = wq_ref.shape[1]
    e = he // heads

    x = x_ref[...]                       # (B, C, H, W) whole tensor (~8 KB)
    wq = wq_ref[...]                     # (C, heads*e)
    wk = wk_ref[...]                     # (C, heads*e)
    wv = wv_ref[...]                     # (C, heads*e)
    wot = wot_ref[...]                   # (C, heads*e) == Wo.T
    bo = bo_ref[...]                     # (1, C)

    # Per-channel (B, H, W) slices.  Every array below keeps the native NCHW
    # minor dims, so no relayout / transpose of activations ever happens.
    xs = [x[:, c] for c in range(C)]

    y = [None] * C
    for h in range(heads):
        wq_h = wq[:, h * e:(h + 1) * e]            # (C, e)
        wk_h = wk[:, h * e:(h + 1) * e]            # (C, e)
        wv_h = wv[:, h * e:(h + 1) * e]            # (C, e)
        wot_h = wot[:, h * e:(h + 1) * e]          # (C, e)

        # Fold the projections into channel-space (C, C) forms (tiny,
        # last-axis reductions only):
        #   A[c, c']  = scale * sum_e Wq[c, e] Wk[c', e]
        #   M[c', co] =          sum_e Wv[c', e] Wo[e, co]
        A = (wq_h[:, None, :] * wk_h[None, :, :]).sum(-1) * scale     # (C, C)
        M = (wv_h[:, None, :] * wot_h[None, :, :]).sum(-1)            # (C, C)

        # Query-side channel mix: xq[c'] = sum_c A[c, c'] * x[:, c]
        xq = []
        for cp in range(C):
            acc = A[0, cp] * xs[0]
            for c in range(1, C):
                acc = acc + A[c, cp] * xs[c]
            xq.append(acc)                                             # (B, H, W)

        # scores = (x A) . x  contracted over channels
        if token_axis == 2:
            # along H: s[b, j, i, w]  (key index j on a leading axis ->
            # softmax is a cheap cross-tile reduction; w stays on lanes)
            s = xq[0][:, None, :, :] * xs[0][:, :, None, :]
            for cp in range(1, C):
                s = s + xq[cp][:, None, :, :] * xs[cp][:, :, None, :]
            red = 1
        else:
            # along W: s[b, h, i, j]  (key index j on lanes -> last-dim softmax)
            s = xq[0][:, :, :, None] * xs[0][:, :, None, :]
            for cp in range(1, C):
                s = s + xq[cp][:, :, :, None] * xs[cp][:, :, None, :]
            red = 3

        # Numerically stable softmax over the key axis; exact reciprocal of
        # the small denominator tensor (no approx EUP rcp -> tight numerics).
        s = s - jnp.max(s, axis=red, keepdims=True)
        p = jnp.exp(s)
        denom = jnp.sum(p, axis=red, keepdims=True)
        p = p * (1.0 / denom)

        # out = P @ (x M), one output channel at a time, accumulated over heads
        for co in range(C):
            xv = M[0, co] * xs[0]
            for cp in range(1, C):
                xv = xv + M[cp, co] * xs[cp]                           # (B, H, W)
            y_co = jnp.sum(p * xv[:, :, None, :], axis=red)            # (B, H, W)
            y[co] = y_co if y[co] is None else y[co] + y_co

    # Write straight back in NCHW orientation (+ output bias, applied once).
    for co in range(C):
        o_ref[:, co, :, :] = (y[co] + bo[0, co]).astype(o_ref.dtype)


# ---------------------------------------------------------------------------
# PermuteToFrom forward (NCHW in, NCHW out, single un-gridded pallas_call)
# ---------------------------------------------------------------------------
def permute_to_from(x, permutation, params, heads=1):
    """Equivalent of PermuteToFrom(permutation, SelfAttention(dim, heads)).forward(x)."""
    wq, wk, wv, wo, bo = params
    permutation = tuple(permutation)
    if x.ndim != 4 or permutation[-1] != 1 or permutation[-2] not in (2, 3):
        raise NotImplementedError(
            "kernel handles the NCHW axial permutations produced by "
            "calculate_permutations(2, 1): (0, 3, 2, 1) and (0, 2, 3, 1)")
    token_axis = permutation[-2]

    B, C, H, W = x.shape
    e = wq.shape[1] // heads
    scale = float(e) ** -0.5

    # Advisory cost estimate so XLA schedules the tiny custom call sensibly.
    t = H if token_axis == 2 else W
    pixels = B * H * W
    flops = int(heads * (4 * C * C * pixels + 4 * C * pixels * t + 6 * pixels * t))
    transcendentals = int(heads * pixels * t)
    bytes_accessed = int(4 * (2 * x.size + wq.size + wk.size + wv.size
                              + wo.size + bo.size))

    kernel = functools.partial(_axial_attention_nchw_kernel,
                               token_axis=token_axis, heads=heads, scale=scale)

    vmem_spec = pl.BlockSpec(memory_space=pltpu.MemorySpace.VMEM)
    return pl.pallas_call(
        kernel,
        out_shape=jax.ShapeDtypeStruct(x.shape, x.dtype),
        in_specs=[vmem_spec] * 6,
        out_specs=vmem_spec,
        cost_estimate=pl.CostEstimate(flops=flops,
                                      transcendentals=transcendentals,
                                      bytes_accessed=bytes_accessed),
    )(x, wq, wk, wv, wo.T, bo)   # wo.T is a 64-byte weight prep, not activation traffic


# ---------------------------------------------------------------------------
# Pure-JAX reference (unfused, highest-precision matmuls) for correctness
# ---------------------------------------------------------------------------
def reference(x, permutation, params, heads=1):
    wq, wk, wv, wo, bo = params
    _, inv_permutation = sort_and_return_indices(list(permutation))
    axial = jnp.transpose(x, permutation)
    shape = axial.shape
    t, d = shape[-2], shape[-1]
    a = axial.reshape(-1, t, d)

    hp = lax.Precision.HIGHEST
    q = jnp.einsum('btd,de->bte', a, wq, precision=hp)
    k = jnp.einsum('btd,de->bte', a, wk, precision=hp)
    v = jnp.einsum('btd,de->bte', a, wv, precision=hp)

    b = a.shape[0]
    e = wq.shape[1] // heads
    merge = lambda z: z.reshape(b, t, heads, e).transpose(0, 2, 1, 3).reshape(b * heads, t, e)
    q, k, v = merge(q), merge(k), merge(v)

    s = jnp.einsum('bie,bje->bij', q, k, precision=hp) * (e ** -0.5)
    p = jax.nn.softmax(s, axis=-1)
    o = jnp.einsum('bij,bje->bie', p, v, precision=hp)
    o = o.reshape(b, heads, t, e).transpose(0, 2, 1, 3).reshape(b, t, heads * e)
    o = jnp.einsum('bte,ed->btd', o, wo, precision=hp) + bo
    o = o.reshape(shape)
    return jnp.transpose(o, inv_permutation)


# ---------------------------------------------------------------------------
if __name__ == "__main__":
    B, C, H, W = 2, 4, 16, 16
    dim, heads = C, 1
    dim_heads = dim // heads

    key = jax.random.PRNGKey(0)
    kx, kq, kk, kv, ko, kb = jax.random.split(key, 6)

    x = jax.random.normal(kx, (B, C, H, W), dtype=jnp.float32)
    wq = jax.random.normal(kq, (dim, heads * dim_heads), dtype=jnp.float32) * 0.1
    wk = jax.random.normal(kk, (dim, heads * dim_heads), dtype=jnp.float32) * 0.1
    wv = jax.random.normal(kv, (dim, heads * dim_heads), dtype=jnp.float32) * 0.1
    wo = jax.random.normal(ko, (heads * dim_heads, dim), dtype=jnp.float32) * 0.1
    bo = jax.random.normal(kb, (1, dim), dtype=jnp.float32) * 0.1
    params = (wq, wk, wv, wo, bo)

    fwd = jax.jit(permute_to_from, static_argnums=(1, 3))

    # Both axial directions used by AxialImageTransformer (dim_index=1):
    #   (0, 3, 2, 1): attention along H;  (0, 2, 3, 1): attention along W.
    for permutation in [tuple(p) for p in calculate_permutations(2, 1)]:
        out = jax.block_until_ready(fwd(x, permutation, params, heads))
        ref = jax.block_until_ready(reference(x, permutation, params, heads))
        assert out.shape == x.shape and out.dtype == x.dtype
        np.testing.assert_allclose(np.asarray(out), np.asarray(ref),
                                   atol=1e-4, rtol=1e-4)

    print("KERNEL_OK")
</pallas_src>

<mosaic_0001>
module attributes {stable_mosaic.version = 11 : i64} {
  func.func @_axial_attention_nchw_kernel(%arg0: memref<2x4x16x16xf32, #tpu.memory_space<vmem>>, %arg1: memref<4x4xf32, #tpu.memory_space<vmem>>, %arg2: memref<4x4xf32, #tpu.memory_space<vmem>>, %arg3: memref<4x4xf32, #tpu.memory_space<vmem>>, %arg4: memref<4x4xf32, #tpu.memory_space<vmem>>, %arg5: memref<1x4xf32, #tpu.memory_space<vmem>>, %arg6: memref<2x4x16x16xf32, #tpu.memory_space<vmem>>) attributes {dimension_semantics = [], scalar_prefetch = 0 : i64, scratch_operands = 0 : i64, tpu.core_type = #tpu.core_type<tc>} {
    %c0 = arith.constant 0 : index
    %c0_0 = arith.constant 0 : index
    %c0_1 = arith.constant 0 : index
    %c0_2 = arith.constant 0 : index
    %0 = vector.load %arg0[%c0, %c0_0, %c0_1, %c0_2] : memref<2x4x16x16xf32, #tpu.memory_space<vmem>>, vector<2x4x16x16xf32>
    %c0_3 = arith.constant 0 : index
    %c0_4 = arith.constant 0 : index
    %1 = vector.load %arg1[%c0_3, %c0_4] : memref<4x4xf32, #tpu.memory_space<vmem>>, vector<4x4xf32>
    %c0_5 = arith.constant 0 : index
    %c0_6 = arith.constant 0 : index
    %2 = vector.load %arg2[%c0_5, %c0_6] : memref<4x4xf32, #tpu.memory_space<vmem>>, vector<4x4xf32>
    %c0_7 = arith.constant 0 : index
    %c0_8 = arith.constant 0 : index
    %3 = vector.load %arg3[%c0_7, %c0_8] : memref<4x4xf32, #tpu.memory_space<vmem>>, vector<4x4xf32>
    %c0_9 = arith.constant 0 : index
    %c0_10 = arith.constant 0 : index
    %4 = vector.load %arg4[%c0_9, %c0_10] : memref<4x4xf32, #tpu.memory_space<vmem>>, vector<4x4xf32>
    %c0_11 = arith.constant 0 : index
    %c0_12 = arith.constant 0 : index
    %5 = vector.load %arg5[%c0_11, %c0_12] : memref<1x4xf32, #tpu.memory_space<vmem>>, vector<1x4xf32>
    %6 = vector.extract_strided_slice %0 {offsets = [0, 0, 0, 0], sizes = [2, 1, 16, 16], strides = [1, 1, 1, 1]} : vector<2x4x16x16xf32> to vector<2x1x16x16xf32>
    %7 = vector.shape_cast %6 : vector<2x1x16x16xf32> to vector<2x16x16xf32>
    %8 = vector.extract_strided_slice %0 {offsets = [0, 1, 0, 0], sizes = [2, 1, 16, 16], strides = [1, 1, 1, 1]} : vector<2x4x16x16xf32> to vector<2x1x16x16xf32>
    %9 = vector.shape_cast %8 : vector<2x1x16x16xf32> to vector<2x16x16xf32>
    %10 = vector.extract_strided_slice %0 {offsets = [0, 2, 0, 0], sizes = [2, 1, 16, 16], strides = [1, 1, 1, 1]} : vector<2x4x16x16xf32> to vector<2x1x16x16xf32>
    %11 = vector.shape_cast %10 : vector<2x1x16x16xf32> to vector<2x16x16xf32>
    %12 = vector.extract_strided_slice %0 {offsets = [0, 3, 0, 0], sizes = [2, 1, 16, 16], strides = [1, 1, 1, 1]} : vector<2x4x16x16xf32> to vector<2x1x16x16xf32>
    %13 = vector.shape_cast %12 : vector<2x1x16x16xf32> to vector<2x16x16xf32>
    %14 = vector.shape_cast %1 : vector<4x4xf32> to vector<4x1x4xf32>
    %15 = vector.shape_cast %2 : vector<4x4xf32> to vector<1x4x4xf32>
    %16 = vector.broadcast %14 : vector<4x1x4xf32> to vector<4x4x4xf32>
    %17 = vector.broadcast %15 : vector<1x4x4xf32> to vector<4x4x4xf32>
    %18 = arith.mulf %16, %17 : vector<4x4x4xf32>
    %cst = arith.constant dense<0.000000e+00> : vector<4x4xf32>
    %19 = vector.multi_reduction <add>, %18, %cst [2] : vector<4x4x4xf32> to vector<4x4xf32>
    %cst_13 = arith.constant 5.000000e-01 : f32
    %20 = vector.broadcast %cst_13 : f32 to vector<4x4xf32>
    %21 = arith.mulf %19, %20 : vector<4x4xf32>
    %22 = vector.shape_cast %3 : vector<4x4xf32> to vector<4x1x4xf32>
    %23 = vector.shape_cast %4 : vector<4x4xf32> to vector<1x4x4xf32>
    %24 = vector.broadcast %22 : vector<4x1x4xf32> to vector<4x4x4xf32>
    %25 = vector.broadcast %23 : vector<1x4x4xf32> to vector<4x4x4xf32>
    %26 = arith.mulf %24, %25 : vector<4x4x4xf32>
    %cst_14 = arith.constant dense<0.000000e+00> : vector<4x4xf32>
    %27 = vector.multi_reduction <add>, %26, %cst_14 [2] : vector<4x4x4xf32> to vector<4x4xf32>
    %28 = vector.extract_strided_slice %21 {offsets = [0, 0], sizes = [1, 1], strides = [1, 1]} : vector<4x4xf32> to vector<1x1xf32>
    %29 = vector.extract %28[0, 0] : f32 from vector<1x1xf32>
    %30 = vector.broadcast %29 : f32 to vector<2x16x16xf32>
    %31 = arith.mulf %30, %7 : vector<2x16x16xf32>
    %32 = vector.extract_strided_slice %21 {offsets = [1, 0], sizes = [1, 1], strides = [1, 1]} : vector<4x4xf32> to vector<1x1xf32>
    %33 = vector.extract %32[0, 0] : f32 from vector<1x1xf32>
    %34 = vector.broadcast %33 : f32 to vector<2x16x16xf32>
    %35 = arith.mulf %34, %9 : vector<2x16x16xf32>
    %36 = arith.addf %31, %35 : vector<2x16x16xf32>
    %37 = vector.extract_strided_slice %21 {offsets = [2, 0], sizes = [1, 1], strides = [1, 1]} : vector<4x4xf32> to vector<1x1xf32>
    %38 = vector.extract %37[0, 0] : f32 from vector<1x1xf32>
    %39 = vector.broadcast %38 : f32 to vector<2x16x16xf32>
    %40 = arith.mulf %39, %11 : vector<2x16x16xf32>
    %41 = arith.addf %36, %40 : vector<2x16x16xf32>
    %42 = vector.extract_strided_slice %21 {offsets = [3, 0], sizes = [1, 1], strides = [1, 1]} : vector<4x4xf32> to vector<1x1xf32>
    %43 = vector.extract %42[0, 0] : f32 from vector<1x1xf32>
    %44 = vector.broadcast %43 : f32 to vector<2x16x16xf32>
    %45 = arith.mulf %44, %13 : vector<2x16x16xf32>
    %46 = arith.addf %41, %45 : vector<2x16x16xf32>
    %47 = vector.extract_strided_slice %21 {offsets = [0, 1], sizes = [1, 1], strides = [1, 1]} : vector<4x4xf32> to vector<1x1xf32>
    %48 = vector.extract %47[0, 0] : f32 from vector<1x1xf32>
    %49 = vector.broadcast %48 : f32 to vector<2x16x16xf32>
    %50 = arith.mulf %49, %7 : vector<2x16x16xf32>
    %51 = vector.extract_strided_slice %21 {offsets = [1, 1], sizes = [1, 1], strides = [1, 1]} : vector<4x4xf32> to vector<1x1xf32>
    %52 = vector.extract %51[0, 0] : f32 from vector<1x1xf32>
    %53 = vector.broadcast %52 : f32 to vector<2x16x16xf32>
    %54 = arith.mulf %53, %9 : vector<2x16x16xf32>
    %55 = arith.addf %50, %54 : vector<2x16x16xf32>
    %56 = vector.extract_strided_slice %21 {offsets = [2, 1], sizes = [1, 1], strides = [1, 1]} : vector<4x4xf32> to vector<1x1xf32>
    %57 = vector.extract %56[0, 0] : f32 from vector<1x1xf32>
    %58 = vector.broadcast %57 : f32 to vector<2x16x16xf32>
    %59 = arith.mulf %58, %11 : vector<2x16x16xf32>
    %60 = arith.addf %55, %59 : vector<2x16x16xf32>
    %61 = vector.extract_strided_slice %21 {offsets = [3, 1], sizes = [1, 1], strides = [1, 1]} : vector<4x4xf32> to vector<1x1xf32>
    %62 = vector.extract %61[0, 0] : f32 from vector<1x1xf32>
    %63 = vector.broadcast %62 : f32 to vector<2x16x16xf32>
    %64 = arith.mulf %63, %13 : vector<2x16x16xf32>
    %65 = arith.addf %60, %64 : vector<2x16x16xf32>
    %66 = vector.extract_strided_slice %21 {offsets = [0, 2], sizes = [1, 1], strides = [1, 1]} : vector<4x4xf32> to vector<1x1xf32>
    %67 = vector.extract %66[0, 0] : f32 from vector<1x1xf32>
    %68 = vector.broadcast %67 : f32 to vector<2x16x16xf32>
    %69 = arith.mulf %68, %7 : vector<2x16x16xf32>
    %70 = vector.extract_strided_slice %21 {offsets = [1, 2], sizes = [1, 1], strides = [1, 1]} : vector<4x4xf32> to vector<1x1xf32>
    %71 = vector.extract %70[0, 0] : f32 from vector<1x1xf32>
    %72 = vector.broadcast %71 : f32 to vector<2x16x16xf32>
    %73 = arith.mulf %72, %9 : vector<2x16x16xf32>
    %74 = arith.addf %69, %73 : vector<2x16x16xf32>
    %75 = vector.extract_strided_slice %21 {offsets = [2, 2], sizes = [1, 1], strides = [1, 1]} : vector<4x4xf32> to vector<1x1xf32>
    %76 = vector.extract %75[0, 0] : f32 from vector<1x1xf32>
    %77 = vector.broadcast %76 : f32 to vector<2x16x16xf32>
    %78 = arith.mulf %77, %11 : vector<2x16x16xf32>
    %79 = arith.addf %74, %78 : vector<2x16x16xf32>
    %80 = vector.extract_strided_slice %21 {offsets = [3, 2], sizes = [1, 1], strides = [1, 1]} : vector<4x4xf32> to vector<1x1xf32>
    %81 = vector.extract %80[0, 0] : f32 from vector<1x1xf32>
    %82 = vector.broadcast %81 : f32 to vector<2x16x16xf32>
    %83 = arith.mulf %82, %13 : vector<2x16x16xf32>
    %84 = arith.addf %79, %83 : vector<2x16x16xf32>
    %85 = vector.extract_strided_slice %21 {offsets = [0, 3], sizes = [1, 1], strides = [1, 1]} : vector<4x4xf32> to vector<1x1xf32>
    %86 = vector.extract %85[0, 0] : f32 from vector<1x1xf32>
    %87 = vector.broadcast %86 : f32 to vector<2x16x16xf32>
    %88 = arith.mulf %87, %7 : vector<2x16x16xf32>
    %89 = vector.extract_strided_slice %21 {offsets = [1, 3], sizes = [1, 1], strides = [1, 1]} : vector<4x4xf32> to vector<1x1xf32>
    %90 = vector.extract %89[0, 0] : f32 from vector<1x1xf32>
    %91 = vector.broadcast %90 : f32 to vector<2x16x16xf32>
    %92 = arith.mulf %91, %9 : vector<2x16x16xf32>
    %93 = arith.addf %88, %92 : vector<2x16x16xf32>
    %94 = vector.extract_strided_slice %21 {offsets = [2, 3], sizes = [1, 1], strides = [1, 1]} : vector<4x4xf32> to vector<1x1xf32>
    %95 = vector.extract %94[0, 0] : f32 from vector<1x1xf32>
    %96 = vector.broadcast %95 : f32 to vector<2x16x16xf32>
    %97 = arith.mulf %96, %11 : vector<2x16x16xf32>
    %98 = arith.addf %93, %97 : vector<2x16x16xf32>
    %99 = vector.extract_strided_slice %21 {offsets = [3, 3], sizes = [1, 1], strides = [1, 1]} : vector<4x4xf32> to vector<1x1xf32>
    %100 = vector.extract %99[0, 0] : f32 from vector<1x1xf32>
    %101 = vector.broadcast %100 : f32 to vector<2x16x16xf32>
    %102 = arith.mulf %101, %13 : vector<2x16x16xf32>
    %103 = arith.addf %98, %102 : vector<2x16x16xf32>
    %104 = vector.shape_cast %46 : vector<2x16x16xf32> to vector<2x1x16x16xf32>
    %105 = vector.shape_cast %7 : vector<2x16x16xf32> to vector<2x16x1x16xf32>
    %106 = vector.broadcast %104 : vector<2x1x16x16xf32> to vector<2x16x16x16xf32>
    %107 = vector.broadcast %105 : vector<2x16x1x16xf32> to vector<2x16x16x16xf32>
    %108 = arith.mulf %106, %107 : vector<2x16x16x16xf32>
    %109 = vector.shape_cast %65 : vector<2x16x16xf32> to vector<2x1x16x16xf32>
    %110 = vector.shape_cast %9 : vector<2x16x16xf32> to vector<2x16x1x16xf32>
    %111 = vector.broadcast %109 : vector<2x1x16x16xf32> to vector<2x16x16x16xf32>
    %112 = vector.broadcast %110 : vector<2x16x1x16xf32> to vector<2x16x16x16xf32>
    %113 = arith.mulf %111, %112 : vector<2x16x16x16xf32>
    %114 = arith.addf %108, %113 : vector<2x16x16x16xf32>
    %115 = vector.shape_cast %84 : vector<2x16x16xf32> to vector<2x1x16x16xf32>
    %116 = vector.shape_cast %11 : vector<2x16x16xf32> to vector<2x16x1x16xf32>
    %117 = vector.broadcast %115 : vector<2x1x16x16xf32> to vector<2x16x16x16xf32>
    %118 = vector.broadcast %116 : vector<2x16x1x16xf32> to vector<2x16x16x16xf32>
    %119 = arith.mulf %117, %118 : vector<2x16x16x16xf32>
    %120 = arith.addf %114, %119 : vector<2x16x16x16xf32>
    %121 = vector.shape_cast %103 : vector<2x16x16xf32> to vector<2x1x16x16xf32>
    %122 = vector.shape_cast %13 : vector<2x16x16xf32> to vector<2x16x1x16xf32>
    %123 = vector.broadcast %121 : vector<2x1x16x16xf32> to vector<2x16x16x16xf32>
    %124 = vector.broadcast %122 : vector<2x16x1x16xf32> to vector<2x16x16x16xf32>
    %125 = arith.mulf %123, %124 : vector<2x16x16x16xf32>
    %126 = arith.addf %120, %125 : vector<2x16x16x16xf32>
    %cst_15 = arith.constant dense<0xFF800000> : vector<2x16x16xf32>
    %127 = vector.multi_reduction <maximumf>, %126, %cst_15 [1] : vector<2x16x16x16xf32> to vector<2x16x16xf32>
    %128 = vector.shape_cast %127 : vector<2x16x16xf32> to vector<2x1x16x16xf32>
    %129 = vector.broadcast %128 : vector<2x1x16x16xf32> to vector<2x16x16x16xf32>
    %130 = arith.subf %126, %129 : vector<2x16x16x16xf32>
    %131 = math.exp %130 : vector<2x16x16x16xf32>
    %cst_16 = arith.constant dense<0.000000e+00> : vector<2x16x16xf32>
    %132 = vector.multi_reduction <add>, %131, %cst_16 [1] : vector<2x16x16x16xf32> to vector<2x16x16xf32>
    %133 = vector.shape_cast %132 : vector<2x16x16xf32> to vector<2x1x16x16xf32>
    %cst_17 = arith.constant 1.000000e+00 : f32
    %134 = vector.broadcast %cst_17 : f32 to vector<2x1x16x16xf32>
    %135 = arith.divf %134, %133 : vector<2x1x16x16xf32>
    %136 = vector.broadcast %135 : vector<2x1x16x16xf32> to vector<2x16x16x16xf32>
    %137 = arith.mulf %131, %136 : vector<2x16x16x16xf32>
    %138 = vector.extract_strided_slice %27 {offsets = [0, 0], sizes = [1, 1], strides = [1, 1]} : vector<4x4xf32> to vector<1x1xf32>
    %139 = vector.extract %138[0, 0] : f32 from vector<1x1xf32>
    %140 = vector.broadcast %139 : f32 to vector<2x16x16xf32>
    %141 = arith.mulf %140, %7 : vector<2x16x16xf32>
    %142 = vector.extract_strided_slice %27 {offsets = [1, 0], sizes = [1, 1], strides = [1, 1]} : vector<4x4xf32> to vector<1x1xf32>
    %143 = vector.extract %142[0, 0] : f32 from vector<1x1xf32>
    %144 = vector.broadcast %143 : f32 to vector<2x16x16xf32>
    %145 = arith.mulf %144, %9 : vector<2x16x16xf32>
    %146 = arith.addf %141, %145 : vector<2x16x16xf32>
    %147 = vector.extract_strided_slice %27 {offsets = [2, 0], sizes = [1, 1], strides = [1, 1]} : vector<4x4xf32> to vector<1x1xf32>
    %148 = vector.extract %147[0, 0] : f32 from vector<1x1xf32>
    %149 = vector.broadcast %148 : f32 to vector<2x16x16xf32>
    %150 = arith.mulf %149, %11 : vector<2x16x16xf32>
    %151 = arith.addf %146, %150 : vector<2x16x16xf32>
    %152 = vector.extract_strided_slice %27 {offsets = [3, 0], sizes = [1, 1], strides = [1, 1]} : vector<4x4xf32> to vector<1x1xf32>
    %153 = vector.extract %152[0, 0] : f32 from vector<1x1xf32>
    %154 = vector.broadcast %153 : f32 to vector<2x16x16xf32>
    %155 = arith.mulf %154, %13 : vector<2x16x16xf32>
    %156 = arith.addf %151, %155 : vector<2x16x16xf32>
    %157 = vector.shape_cast %156 : vector<2x16x16xf32> to vector<2x16x1x16xf32>
    %158 = vector.broadcast %157 : vector<2x16x1x16xf32> to vector<2x16x16x16xf32>
    %159 = arith.mulf %137, %158 : vector<2x16x16x16xf32>
    %cst_18 = arith.constant dense<0.000000e+00> : vector<2x16x16xf32>
    %160 = vector.multi_reduction <add>, %159, %cst_18 [1] : vector<2x16x16x16xf32> to vector<2x16x16xf32>
    %161 = vector.extract_strided_slice %27 {offsets = [0, 1], sizes = [1, 1], strides = [1, 1]} : vector<4x4xf32> to vector<1x1xf32>
    %162 = vector.extract %161[0, 0] : f32 from vector<1x1xf32>
    %163 = vector.broadcast %162 : f32 to vector<2x16x16xf32>
    %164 = arith.mulf %163, %7 : vector<2x16x16xf32>
    %165 = vector.extract_strided_slice %27 {offsets = [1, 1], sizes = [1, 1], strides = [1, 1]} : vector<4x4xf32> to vector<1x1xf32>
    %166 = vector.extract %165[0, 0] : f32 from vector<1x1xf32>
    %167 = vector.broadcast %166 : f32 to vector<2x16x16xf32>
    %168 = arith.mulf %167, %9 : vector<2x16x16xf32>
    %169 = arith.addf %164, %168 : vector<2x16x16xf32>
    %170 = vector.extract_strided_slice %27 {offsets = [2, 1], sizes = [1, 1], strides = [1, 1]} : vector<4x4xf32> to vector<1x1xf32>
    %171 = vector.extract %170[0, 0] : f32 from vector<1x1xf32>
    %172 = vector.broadcast %171 : f32 to vector<2x16x16xf32>
    %173 = arith.mulf %172, %11 : vector<2x16x16xf32>
    %174 = arith.addf %169, %173 : vector<2x16x16xf32>
    %175 = vector.extract_strided_slice %27 {offsets = [3, 1], sizes = [1, 1], strides = [1, 1]} : vector<4x4xf32> to vector<1x1xf32>
    %176 = vector.extract %175[0, 0] : f32 from vector<1x1xf32>
    %177 = vector.broadcast %176 : f32 to vector<2x16x16xf32>
    %178 = arith.mulf %177, %13 : vector<2x16x16xf32>
    %179 = arith.addf %174, %178 : vector<2x16x16xf32>
    %180 = vector.shape_cast %179 : vector<2x16x16xf32> to vector<2x16x1x16xf32>
    %181 = vector.broadcast %180 : vector<2x16x1x16xf32> to vector<2x16x16x16xf32>
    %182 = arith.mulf %137, %181 : vector<2x16x16x16xf32>
    %cst_19 = arith.constant dense<0.000000e+00> : vector<2x16x16xf32>
    %183 = vector.multi_reduction <add>, %182, %cst_19 [1] : vector<2x16x16x16xf32> to vector<2x16x16xf32>
    %184 = vector.extract_strided_slice %27 {offsets = [0, 2], sizes = [1, 1], strides = [1, 1]} : vector<4x4xf32> to vector<1x1xf32>
    %185 = vector.extract %184[0, 0] : f32 from vector<1x1xf32>
    %186 = vector.broadcast %185 : f32 to vector<2x16x16xf32>
    %187 = arith.mulf %186, %7 : vector<2x16x16xf32>
    %188 = vector.extract_strided_slice %27 {offsets = [1, 2], sizes = [1, 1], strides = [1, 1]} : vector<4x4xf32> to vector<1x1xf32>
    %189 = vector.extract %188[0, 0] : f32 from vector<1x1xf32>
    %190 = vector.broadcast %189 : f32 to vector<2x16x16xf32>
    %191 = arith.mulf %190, %9 : vector<2x16x16xf32>
    %192 = arith.addf %187, %191 : vector<2x16x16xf32>
    %193 = vector.extract_strided_slice %27 {offsets = [2, 2], sizes = [1, 1], strides = [1, 1]} : vector<4x4xf32> to vector<1x1xf32>
    %194 = vector.extract %193[0, 0] : f32 from vector<1x1xf32>
    %195 = vector.broadcast %194 : f32 to vector<2x16x16xf32>
    %196 = arith.mulf %195, %11 : vector<2x16x16xf32>
    %197 = arith.addf %192, %196 : vector<2x16x16xf32>
    %198 = vector.extract_strided_slice %27 {offsets = [3, 2], sizes = [1, 1], strides = [1, 1]} : vector<4x4xf32> to vector<1x1xf32>
    %199 = vector.extract %198[0, 0] : f32 from vector<1x1xf32>
    %200 = vector.broadcast %199 : f32 to vector<2x16x16xf32>
    %201 = arith.mulf %200, %13 : vector<2x16x16xf32>
    %202 = arith.addf %197, %201 : vector<2x16x16xf32>
    %203 = vector.shape_cast %202 : vector<2x16x16xf32> to vector<2x16x1x16xf32>
    %204 = vector.broadcast %203 : vector<2x16x1x16xf32> to vector<2x16x16x16xf32>
    %205 = arith.mulf %137, %204 : vector<2x16x16x16xf32>
    %cst_20 = arith.constant dense<0.000000e+00> : vector<2x16x16xf32>
    %206 = vector.multi_reduction <add>, %205, %cst_20 [1] : vector<2x16x16x16xf32> to vector<2x16x16xf32>
    %207 = vector.extract_strided_slice %27 {offsets = [0, 3], sizes = [1, 1], strides = [1, 1]} : vector<4x4xf32> to vector<1x1xf32>
    %208 = vector.extract %207[0, 0] : f32 from vector<1x1xf32>
    %209 = vector.broadcast %208 : f32 to vector<2x16x16xf32>
    %210 = arith.mulf %209, %7 : vector<2x16x16xf32>
    %211 = vector.extract_strided_slice %27 {offsets = [1, 3], sizes = [1, 1], strides = [1, 1]} : vector<4x4xf32> to vector<1x1xf32>
    %212 = vector.extract %211[0, 0] : f32 from vector<1x1xf32>
    %213 = vector.broadcast %212 : f32 to vector<2x16x16xf32>
    %214 = arith.mulf %213, %9 : vector<2x16x16xf32>
    %215 = arith.addf %210, %214 : vector<2x16x16xf32>
    %216 = vector.extract_strided_slice %27 {offsets = [2, 3], sizes = [1, 1], strides = [1, 1]} : vector<4x4xf32> to vector<1x1xf32>
    %217 = vector.extract %216[0, 0] : f32 from vector<1x1xf32>
    %218 = vector.broadcast %217 : f32 to vector<2x16x16xf32>
    %219 = arith.mulf %218, %11 : vector<2x16x16xf32>
    %220 = arith.addf %215, %219 : vector<2x16x16xf32>
    %221 = vector.extract_strided_slice %27 {offsets = [3, 3], sizes = [1, 1], strides = [1, 1]} : vector<4x4xf32> to vector<1x1xf32>
    %222 = vector.extract %221[0, 0] : f32 from vector<1x1xf32>
    %223 = vector.broadcast %222 : f32 to vector<2x16x16xf32>
    %224 = arith.mulf %223, %13 : vector<2x16x16xf32>
    %225 = arith.addf %220, %224 : vector<2x16x16xf32>
    %226 = vector.shape_cast %225 : vector<2x16x16xf32> to vector<2x16x1x16xf32>
    %227 = vector.broadcast %226 : vector<2x16x1x16xf32> to vector<2x16x16x16xf32>
    %228 = arith.mulf %137, %227 : vector<2x16x16x16xf32>
    %cst_21 = arith.constant dense<0.000000e+00> : vector<2x16x16xf32>
    %229 = vector.multi_reduction <add>, %228, %cst_21 [1] : vector<2x16x16x16xf32> to vector<2x16x16xf32>
    %230 = vector.extract_strided_slice %5 {offsets = [0, 0], sizes = [1, 1], strides = [1, 1]} : vector<1x4xf32> to vector<1x1xf32>
    %231 = vector.extract %230[0, 0] : f32 from vector<1x1xf32>
    %232 = vector.broadcast %231 : f32 to vector<2x16x16xf32>
    %233 = arith.addf %160, %232 : vector<2x16x16xf32>
    %c0_22 = arith.constant 0 : index
    %c0_23 = arith.constant 0 : index
    %c0_24 = arith.constant 0 : index
    %c0_25 = arith.constant 0 : index
    %234 = vector.load %arg6[%c0_22, %c0_23, %c0_24, %c0_25] : memref<2x4x16x16xf32, #tpu.memory_space<vmem>>, vector<2x1x16x16xf32>
    %235 = vector.shape_cast %234 : vector<2x1x16x16xf32> to vector<2x16x16xf32>
    %236 = vector.shape_cast %233 : vector<2x16x16xf32> to vector<2x1x16x16xf32>
    tpu.vector_store %arg6[%c0_22, %c0_23, %c0_24, %c0_25], %236 {strides = array<i32>} : memref<2x4x16x16xf32, #tpu.memory_space<vmem>>, vector<2x1x16x16xf32>,
    %237 = vector.extract_strided_slice %5 {offsets = [0, 1], sizes = [1, 1], strides = [1, 1]} : vector<1x4xf32> to vector<1x1xf32>
    %238 = vector.extract %237[0, 0] : f32 from vector<1x1xf32>
    %239 = vector.broadcast %238 : f32 to vector<2x16x16xf32>
    %240 = arith.addf %183, %239 : vector<2x16x16xf32>
    %c0_26 = arith.constant 0 : index
    %c1 = arith.constant 1 : index
    %c0_27 = arith.constant 0 : index
    %c0_28 = arith.constant 0 : index
    %241 = vector.load %arg6[%c0_26, %c1, %c0_27, %c0_28] : memref<2x4x16x16xf32, #tpu.memory_space<vmem>>, vector<2x1x16x16xf32>
    %242 = vector.shape_cast %241 : vector<2x1x16x16xf32> to vector<2x16x16xf32>
    %243 = vector.shape_cast %240 : vector<2x16x16xf32> to vector<2x1x16x16xf32>
    tpu.vector_store %arg6[%c0_26, %c1, %c0_27, %c0_28], %243 {strides = array<i32>} : memref<2x4x16x16xf32, #tpu.memory_space<vmem>>, vector<2x1x16x16xf32>,
    %244 = vector.extract_strided_slice %5 {offsets = [0, 2], sizes = [1, 1], strides = [1, 1]} : vector<1x4xf32> to vector<1x1xf32>
    %245 = vector.extract %244[0, 0] : f32 from vector<1x1xf32>
    %246 = vector.broadcast %245 : f32 to vector<2x16x16xf32>
    %247 = arith.addf %206, %246 : vector<2x16x16xf32>
    %c0_29 = arith.constant 0 : index
    %c2 = arith.constant 2 : index
    %c0_30 = arith.constant 0 : index
    %c0_31 = arith.constant 0 : index
    %248 = vector.load %arg6[%c0_29, %c2, %c0_30, %c0_31] : memref<2x4x16x16xf32, #tpu.memory_space<vmem>>, vector<2x1x16x16xf32>
    %249 = vector.shape_cast %248 : vector<2x1x16x16xf32> to vector<2x16x16xf32>
    %250 = vector.shape_cast %247 : vector<2x16x16xf32> to vector<2x1x16x16xf32>
    tpu.vector_store %arg6[%c0_29, %c2, %c0_30, %c0_31], %250 {strides = array<i32>} : memref<2x4x16x16xf32, #tpu.memory_space<vmem>>, vector<2x1x16x16xf32>,
    %251 = vector.extract_strided_slice %5 {offsets = [0, 3], sizes = [1, 1], strides = [1, 1]} : vector<1x4xf32> to vector<1x1xf32>
    %252 = vector.extract %251[0, 0] : f32 from vector<1x1xf32>
    %253 = vector.broadcast %252 : f32 to vector<2x16x16xf32>
    %254 = arith.addf %229, %253 : vector<2x16x16xf32>
    %c0_32 = arith.constant 0 : index
    %c3 = arith.constant 3 : index
    %c0_33 = arith.constant 0 : index
    %c0_34 = arith.constant 0 : index
    %255 = vector.load %arg6[%c0_32, %c3, %c0_33, %c0_34] : memref<2x4x16x16xf32, #tpu.memory_space<vmem>>, vector<2x1x16x16xf32>
    %256 = vector.shape_cast %255 : vector<2x1x16x16xf32> to vector<2x16x16xf32>
    %257 = vector.shape_cast %254 : vector<2x16x16xf32> to vector<2x1x16x16xf32>
    tpu.vector_store %arg6[%c0_32, %c3, %c0_33, %c0_34], %257 {strides = array<i32>} : memref<2x4x16x16xf32, #tpu.memory_space<vmem>>, vector<2x1x16x16xf32>,
    return
  }
}

</mosaic_0001>

<llo_original>
// kernel: permute_to_from.1
$region0: #{permute_to_from.1}
  #allocation0 [shape = 'u32[]', space=smem, size = 0x4, offset = 0x4, fixed_abs, tag = 'smem constant byte address 0x4 - core index']
  #allocation1 [shape = 'u32[72,128]{1,0:T(1,128)}', space=vmem, size = 0x9000, scoped, tag = 'internal scratch']
  %s0 = inlined_call_operand.hbm [shape: f32[2,4,16,16], index: 0, kind: input, shape index: {}]
  %s1 = inlined_call_operand.vmem [shape: f32[4,4], index: 1, kind: input, shape index: {}]
  %s2 = inlined_call_operand.vmem [shape: f32[4,4], index: 2, kind: input, shape index: {}]
  %s3 = inlined_call_operand.hbm [shape: f32[4,4], index: 3, kind: input, shape index: {}]
  %s4 = inlined_call_operand.vmem [shape: f32[4,4], index: 4, kind: input, shape index: {}]
  %s5 = inlined_call_operand.vmem [shape: f32[1,4], index: 5, kind: input, shape index: {}]
  %s6 = inlined_call_operand.hbm [shape: f32[2,4,16,16], index: 6, kind: output, shape index: {}]
  %s7 = sld [smem:[#allocation0]]
  $region42: #{permute_to_from.1} parent=0
    _
  %s9 = ssub.s32 1, %s7
  %s10 = scalar_select 0, %s9, %s7
  $region1: #{permute_to_from.1} parent=0
    #allocation2 [shape = 'u8[65536]{0}', space=vmem, size = 0x10000, scoped, tag = 'input window, operand 0, single buffered']
    #allocation3 [shape = 's32[1]{0}', space=sflag, size = 0x4, scoped, tag = 'scoped memory for permute_to_from.1']
    #allocation4 [shape = 's32[1]{0}', space=sflag, size = 0x4, scoped, tag = 'scoped memory for permute_to_from.1']
    #allocation5 [shape = 'u8[2048]{0}', space=vmem, size = 0x800, scoped, tag = 'input window, operand 3, single buffered']
    #allocation6 [shape = 's32[1]{0}', space=sflag, size = 0x4, scoped, tag = 'scoped memory for permute_to_from.1']
    #allocation7 [shape = 'u8[65536]{0}', space=vmem, size = 0x10000, scoped, tag = 'output window, operand 0, single buffered']
    %11 = vsyncpa [#allocation3], 0
    %12 = vsyncpa [#allocation6], 0
    %13 = vsyncpa [#allocation4], 0
    // Predicated region
    $region2: #{permute_to_from.1} parent=1 // pred_check
      _
    $region3: #{permute_to_from.1} parent=1 // pred_check_branch
      %15 = sbr.rel (0) target = $region5
    $region4: #{permute_to_from.1} parent=1 // pred_region
      %17 = vsyncadd [#allocation3], 0
      %s18 = sshll.u32 %s0, 4
      %s19 = int_to_ptr.hbm [resolvable:$true] %s18
      %s20 = sshll.u32 [#allocation2], 4
      %s21 = int_to_ptr.vmem [resolvable:$true] %s20
      %26 = dma.hbm_to_vmem [thread:$0]  %s19, 2048, %s21, [#allocation3], 128, 128, 8
    $region5: #{permute_to_from.1} parent=1 // pred_fallthru
      _
    // Predicated region
    $region6: #{permute_to_from.1} parent=1 // pred_check
      _
    $region7: #{permute_to_from.1} parent=1 // pred_check_branch
      %28 = sbr.rel (0) target = $region9
    $region8: #{permute_to_from.1} parent=1 // pred_region
      _
    $region9: #{permute_to_from.1} parent=1 // pred_fallthru
      _
    // Predicated region
    $region10: #{permute_to_from.1} parent=1 // pred_check
      _
    $region11: #{permute_to_from.1} parent=1 // pred_check_branch
      %30 = sbr.rel (0) target = $region13
    $region12: #{permute_to_from.1} parent=1 // pred_region
      _
    $region13: #{permute_to_from.1} parent=1 // pred_fallthru
      _
    // Predicated region
    $region14: #{permute_to_from.1} parent=1 // pred_check
      _
    $region15: #{permute_to_from.1} parent=1 // pred_check_branch
      %32 = sbr.rel (0) target = $region17
    $region16: #{permute_to_from.1} parent=1 // pred_region
      %34 = vsyncadd [#allocation6], 0
      %s36 = sshll.u32 %s3, 4
      %s37 = int_to_ptr.hbm [resolvable:$true] %s36
      %s38 = sshll.u32 [#allocation5], 4
      %s39 = int_to_ptr.vmem [resolvable:$true] %s38
      %41 = dma.hbm_to_vmem [thread:$0]  %s37, 64, %s39, [#allocation6]
    $region17: #{permute_to_from.1} parent=1 // pred_fallthru
      _
    // Predicated region
    $region18: #{permute_to_from.1} parent=1 // pred_check
      _
    $region19: #{permute_to_from.1} parent=1 // pred_check_branch
      %43 = sbr.rel (0) target = $region21
    $region20: #{permute_to_from.1} parent=1 // pred_region
      _
    $region21: #{permute_to_from.1} parent=1 // pred_fallthru
      _
    // Predicated region
    $region22: #{permute_to_from.1} parent=1 // pred_check
      _
    $region23: #{permute_to_from.1} parent=1 // pred_check_branch
      %45 = sbr.rel (0) target = $region25
    $region24: #{permute_to_from.1} parent=1 // pred_region
      _
    $region25: #{permute_to_from.1} parent=1 // pred_fallthru
      _
    // Predicated region
    $region26: #{permute_to_from.1} parent=1 // pred_check
      _
    $region27: #{permute_to_from.1} parent=1 // pred_check_branch
      %47 = sbr.rel (0) target = $region29
    $region28: #{permute_to_from.1} parent=1 // pred_region
      %49 = dma.done [#allocation3], 2048
    $region29: #{permute_to_from.1} parent=1 // pred_fallthru
      _
    // Predicated region
    $region30: #{permute_to_from.1} parent=1 // pred_check
      _
    $region31: #{permute_to_from.1} parent=1 // pred_check_branch
      %51 = sbr.rel (0) target = $region33
    $region32: #{permute_to_from.1} parent=1 // pred_region
      %53 = dma.done [#allocation6], 64
    $region33: #{permute_to_from.1} parent=1 // pred_fallthru
      _
    %v54 = vld [vmem:[#allocation2] sm:$0xff]
    %v55 = vld [vmem:[#allocation2 + $0x8] sm:$0xff]
    %v56 = vld [vmem:[#allocation2 + $0x10] sm:$0xff]
    %v57 = vld [vmem:[#allocation2 + $0x18] sm:$0xff]
    %v58 = vld [vmem:[#allocation2 + $0x20] sm:$0xff]
    %v59 = vld [vmem:[#allocation2 + $0x28] sm:$0xff]
    %v60 = vld [vmem:[#allocation2 + $0x30] sm:$0xff]
    %v61 = vld [vmem:[#allocation2 + $0x38] sm:$0xff]
    %v62 = vld [vmem:[#allocation2 + $0x40] sm:$0xff]
    %v63 = vld [vmem:[#allocation2 + $0x48] sm:$0xff]
    %v64 = vld [vmem:[#allocation2 + $0x50] sm:$0xff]
    %v65 = vld [vmem:[#allocation2 + $0x58] sm:$0xff]
    %v66 = vld [vmem:[#allocation2 + $0x60] sm:$0xff]
    %v67 = vld [vmem:[#allocation2 + $0x68] sm:$0xff]
    %v68 = vld [vmem:[#allocation2 + $0x70] sm:$0xff]
    %v69 = vld [vmem:[#allocation2 + $0x78] sm:$0xff]
    %v70 = vld [vmem:[%s1] sm:$0xf]
    %v71 = vld [vmem:[%s2] sm:$0xf]
    %v72 = vld [vmem:[#allocation5] sm:$0xf]
    %v73 = vld [vmem:[%s4] sm:$0xf]
    %v74 = vld [vmem:[%s5] sm:$0x1]
    %v76 = vrot.slane %v70, 1
    %v77 = vrot.slane %v70, 2
    %v78 = vrot.slane %v70, 3
    %v79 = vperm.slane %v70, 0
    %v80 = vperm.slane %v76, 0
    %v81 = vperm.slane %v77, 0
    %v82 = vperm.slane %v78, 0
    %v87 = vmul.f32 %v79, %v71
    %v88 = vmul.f32 %v80, %v71
    %v89 = vmul.f32 %v81, %v71
    %v90 = vmul.f32 %v82, %v71
    %vm91 = vcmask 27648
    %v92 = vsel %vm91, %v87, 0.0
    %93 = vadd.xlane.f32.xlu0 %v92
    %v94 = vpop.xlane.xlu0 %93
    %v95 = vsel %vm91, %v88, 0.0
    %96 = vadd.xlane.f32.xlu0 %v95
    %v97 = vpop.xlane.xlu0 %96
    %v98 = vsel %vm91, %v89, 0.0
    %99 = vadd.xlane.f32.xlu0 %v98
    %v100 = vpop.xlane.xlu0 %99
    %v101 = vsel %vm91, %v90, 0.0
    %102 = vadd.xlane.f32.xlu0 %v101
    %v103 = vpop.xlane.xlu0 %102
    %v104 = vmul.f32 %v94, 0.5
    %v105 = vmul.f32 %v97, 0.5
    %v106 = vmul.f32 %v100, 0.5
    %v107 = vmul.f32 %v103, 0.5
    %v109 = vrot.slane %v72, 1
    %v110 = vrot.slane %v72, 2
    %v111 = vrot.slane %v72, 3
    %v112 = vperm.slane %v72, 0
    %v113 = vperm.slane %v109, 0
    %v114 = vperm.slane %v110, 0
    %v115 = vperm.slane %v111, 0
    %v120 = vmul.f32 %v112, %v73
    %v121 = vmul.f32 %v113, %v73
    %v122 = vmul.f32 %v114, %v73
    %v123 = vmul.f32 %v115, %v73
    %v124 = vsel %vm91, %v120, 0.0
    %125 = vadd.xlane.f32.xlu0 %v124
    %v126 = vpop.xlane.xlu0 %125
    %v127 = vsel %vm91, %v121, 0.0
    %128 = vadd.xlane.f32.xlu0 %v127
    %v129 = vpop.xlane.xlu0 %128
    %v130 = vsel %vm91, %v122, 0.0
    %131 = vadd.xlane.f32.xlu0 %v130
    %v132 = vpop.xlane.xlu0 %131
    %v133 = vsel %vm91, %v123, 0.0
    %134 = vadd.xlane.f32.xlu0 %v133
    %v135 = vpop.xlane.xlu0 %134
    %s136 = vtos %v104
    %v137 = vstv %s136
    %v138 = vmul.f32 %v137, %v54
    %v139 = vmul.f32 %v137, %v55
    %v140 = vmul.f32 %v137, %v62
    %v141 = vmul.f32 %v137, %v63
    %s142 = vtos %v105
    %v143 = vstv %s142
    %v144 = vmul.f32 %v143, %v56
    %v145 = vmul.f32 %v143, %v57
    %v146 = vmul.f32 %v143, %v64
    %v147 = vmul.f32 %v143, %v65
    %v148 = vadd.f32 %v138, %v144
    %v149 = vadd.f32 %v139, %v145
    %v150 = vadd.f32 %v140, %v146
    %v151 = vadd.f32 %v141, %v147
    %s152 = vtos %v106
    %v153 = vstv %s152
    %v154 = vmul.f32 %v153, %v58
    %v155 = vmul.f32 %v153, %v59
    %v156 = vmul.f32 %v153, %v66
    %v157 = vmul.f32 %v153, %v67
    %v158 = vadd.f32 %v148, %v154
    %v159 = vadd.f32 %v149, %v155
    %v160 = vadd.f32 %v150, %v156
    %v161 = vadd.f32 %v151, %v157
    %s162 = vtos %v107
    %v163 = vstv %s162
    %v164 = vmul.f32 %v163, %v60
    %v165 = vmul.f32 %v163, %v61
    %v166 = vmul.f32 %v163, %v68
    %v167 = vmul.f32 %v163, %v69
    %v168 = vadd.f32 %v158, %v164
    %v169 = vadd.f32 %v159, %v165
    %v170 = vadd.f32 %v160, %v166
    %v171 = vadd.f32 %v161, %v167
    %v172 = vrot.slane %v104, 1
    %s173 = vtos %v172
    %v174 = vstv %s173
    %v175 = vmul.f32 %v174, %v54
    %v176 = vmul.f32 %v174, %v55
    %v177 = vmul.f32 %v174, %v62
    %v178 = vmul.f32 %v174, %v63
    %v179 = vrot.slane %v105, 1
    %s180 = vtos %v179
    %v181 = vstv %s180
    %v182 = vmul.f32 %v181, %v56
    %v183 = vmul.f32 %v181, %v57
    %v184 = vmul.f32 %v181, %v64
    %v185 = vmul.f32 %v181, %v65
    %v186 = vadd.f32 %v175, %v182
    %v187 = vadd.f32 %v176, %v183
    %v188 = vadd.f32 %v177, %v184
    %v189 = vadd.f32 %v178, %v185
    %v190 = vrot.slane %v106, 1
    %s191 = vtos %v190
    %v192 = vstv %s191
    %v193 = vmul.f32 %v192, %v58
    %v194 = vmul.f32 %v192, %v59
    %v195 = vmul.f32 %v192, %v66
    %v196 = vmul.f32 %v192, %v67
    %v197 = vadd.f32 %v186, %v193
    %v198 = vadd.f32 %v187, %v194
    %v199 = vadd.f32 %v188, %v195
    %v200 = vadd.f32 %v189, %v196
    %v201 = vrot.slane %v107, 1
    %s202 = vtos %v201
    %v203 = vstv %s202
    %v204 = vmul.f32 %v203, %v60
    %v205 = vmul.f32 %v203, %v61
    %v206 = vmul.f32 %v203, %v68
    %v207 = vmul.f32 %v203, %v69
    %v208 = vadd.f32 %v197, %v204
    %v209 = vadd.f32 %v198, %v205
    %v210 = vadd.f32 %v199, %v206
    %v211 = vadd.f32 %v200, %v207
    %v212 = vrot.slane %v104, 2
    %s213 = vtos %v212
    %v214 = vstv %s213
    %v215 = vmul.f32 %v214, %v54
    %v216 = vmul.f32 %v214, %v55
    %v217 = vmul.f32 %v214, %v62
    %v218 = vmul.f32 %v214, %v63
    %v219 = vrot.slane %v105, 2
    %s220 = vtos %v219
    %v221 = vstv %s220
    %v222 = vmul.f32 %v221, %v56
    %v223 = vmul.f32 %v221, %v57
    %v224 = vmul.f32 %v221, %v64
    %v225 = vmul.f32 %v221, %v65
    %v226 = vadd.f32 %v215, %v222
    %v227 = vadd.f32 %v216, %v223
    %v228 = vadd.f32 %v217, %v224
    %v229 = vadd.f32 %v218, %v225
    %v230 = vrot.slane %v106, 2
    %s231 = vtos %v230
    %v232 = vstv %s231
    %v233 = vmul.f32 %v232, %v58
    %v234 = vmul.f32 %v232, %v59
    %v235 = vmul.f32 %v232, %v66
    %v236 = vmul.f32 %v232, %v67
    %v237 = vadd.f32 %v226, %v233
    %v238 = vadd.f32 %v227, %v234
    %v239 = vadd.f32 %v228, %v235
    %v240 = vadd.f32 %v229, %v236
    %v241 = vrot.slane %v107, 2
    %s242 = vtos %v241
    %v243 = vstv %s242
    %v244 = vmul.f32 %v243, %v60
    %v245 = vmul.f32 %v243, %v61
    %v246 = vmul.f32 %v243, %v68
    %v247 = vmul.f32 %v243, %v69
    %v248 = vadd.f32 %v237, %v244
    %v249 = vadd.f32 %v238, %v245
    %v250 = vadd.f32 %v239, %v246
    %v251 = vadd.f32 %v240, %v247
    %v252 = vrot.slane %v104, 3
    %s253 = vtos %v252
    %v254 = vstv %s253
    %v255 = vmul.f32 %v254, %v54
    %v256 = vmul.f32 %v254, %v55
    %v257 = vmul.f32 %v254, %v62
    %v258 = vmul.f32 %v254, %v63
    %v259 = vrot.slane %v105, 3
    %s260 = vtos %v259
    %v261 = vstv %s260
    %v262 = vmul.f32 %v261, %v56
    %v263 = vmul.f32 %v261, %v57
    %v264 = vmul.f32 %v261, %v64
    %v265 = vmul.f32 %v261, %v65
    %v266 = vadd.f32 %v255, %v262
    %v267 = vadd.f32 %v256, %v263
    %v268 = vadd.f32 %v257, %v264
    %v269 = vadd.f32 %v258, %v265
    %v270 = vrot.slane %v106, 3
    %s271 = vtos %v270
    %v272 = vstv %s271
    %v273 = vmul.f32 %v272, %v58
    %v274 = vmul.f32 %v272, %v59
    %v275 = vmul.f32 %v272, %v66
    %v276 = vmul.f32 %v272, %v67
    %v277 = vadd.f32 %v266, %v273
    %v278 = vadd.f32 %v267, %v274
    %v279 = vadd.f32 %v268, %v275
    %v280 = vadd.f32 %v269, %v276
    %v281 = vrot.slane %v107, 3
    %s282 = vtos %v281
    %v283 = vstv %s282
    %v284 = vmul.f32 %v283, %v60
    %v285 = vmul.f32 %v283, %v61
    %v286 = vmul.f32 %v283, %v68
    %v287 = vmul.f32 %v283, %v69
    %v288 = vadd.f32 %v277, %v284
    %v289 = vadd.f32 %v278, %v285
    %v290 = vadd.f32 %v279, %v286
    %v291 = vadd.f32 %v280, %v287
    %v296 = vrot.slane %v54, 1
    %v297 = vrot.slane %v54, 2
    %v298 = vrot.slane %v54, 3
    %v299 = vrot.slane %v54, 4
    %v300 = vrot.slane %v54, 5
    %v301 = vrot.slane %v54, 6
    %v302 = vrot.slane %v54, 7
    %v303 = vrot.slane %v55, 1
    %v304 = vrot.slane %v55, 2
    %v305 = vrot.slane %v55, 3
    %v306 = vrot.slane %v55, 4
    %v307 = vrot.slane %v55, 5
    %v308 = vrot.slane %v55, 6
    %v309 = vrot.slane %v55, 7
    %v310 = vrot.slane %v62, 1
    %v311 = vrot.slane %v62, 2
    %v312 = vrot.slane %v62, 3
    %v313 = vrot.slane %v62, 4
    %v314 = vrot.slane %v62, 5
    %v315 = vrot.slane %v62, 6
    %v316 = vrot.slane %v62, 7
    %v317 = vrot.slane %v63, 1
    %v318 = vrot.slane %v63, 2
    %v319 = vrot.slane %v63, 3
    %v320 = vrot.slane %v63, 4
    %v321 = vrot.slane %v63, 5
    %v322 = vrot.slane %v63, 6
    %v323 = vrot.slane %v63, 7
    %v324 = vperm.slane %v54, 0
    %v325 = vperm.slane %v296, 0
    %v326 = vperm.slane %v297, 0
    %v327 = vperm.slane %v298, 0
    %v328 = vperm.slane %v299, 0
    %v329 = vperm.slane %v300, 0
    %v330 = vperm.slane %v301, 0
    %v331 = vperm.slane %v302, 0
    %v332 = vperm.slane %v55, 0
    %v333 = vperm.slane %v303, 0
    %v334 = vperm.slane %v304, 0
    %v335 = vperm.slane %v305, 0
    %v336 = vperm.slane %v306, 0
    %v337 = vperm.slane %v307, 0
    %v338 = vperm.slane %v308, 0
    %v339 = vperm.slane %v309, 0
    %v340 = vperm.slane %v62, 0
    %v341 = vperm.slane %v310, 0
    %v342 = vperm.slane %v311, 0
    %v343 = vperm.slane %v312, 0
    %v344 = vperm.slane %v313, 0
    %v345 = vperm.slane %v314, 0
    %v346 = vperm.slane %v315, 0
    %v347 = vperm.slane %v316, 0
    %v348 = vperm.slane %v63, 0
    %v349 = vperm.slane %v317, 0
    %v350 = vperm.slane %v318, 0
    %v351 = vperm.slane %v319, 0
    %v352 = vperm.slane %v320, 0
    %v353 = vperm.slane %v321, 0
    %v354 = vperm.slane %v322, 0
    %v355 = vperm.slane %v323, 0
    %v388 = vmul.f32 %v168, %v324
    %v389 = vmul.f32 %v169, %v324
    %v390 = vmul.f32 %v168, %v325
    %v391 = vmul.f32 %v169, %v325
    %v392 = vmul.f32 %v168, %v326
    %v393 = vmul.f32 %v169, %v326
    %v394 = vmul.f32 %v168, %v327
    %v395 = vmul.f32 %v169, %v327
    %v396 = vmul.f32 %v168, %v328
    %v397 = vmul.f32 %v169, %v328
    %v398 = vmul.f32 %v168, %v329
    %v399 = vmul.f32 %v169, %v329
    %v400 = vmul.f32 %v168, %v330
    %v401 = vmul.f32 %v169, %v330
    %v402 = vmul.f32 %v168, %v331
    %v403 = vmul.f32 %v169, %v331
    %v404 = vmul.f32 %v168, %v332
    %v405 = vmul.f32 %v169, %v332
    %v406 = vmul.f32 %v168, %v333
    %v407 = vmul.f32 %v169, %v333
    %v408 = vmul.f32 %v168, %v334
    %v409 = vmul.f32 %v169, %v334
    %v410 = vmul.f32 %v168, %v335
    %v411 = vmul.f32 %v169, %v335
    %v412 = vmul.f32 %v168, %v336
    %v413 = vmul.f32 %v169, %v336
    %v414 = vmul.f32 %v168, %v337
    %v415 = vmul.f32 %v169, %v337
    %v416 = vmul.f32 %v168, %v338
    %v417 = vmul.f32 %v169, %v338
    %v418 = vmul.f32 %v168, %v339
    %v419 = vmul.f32 %v169, %v339
    %v420 = vmul.f32 %v170, %v340
    %v421 = vmul.f32 %v171, %v340
    %v422 = vmul.f32 %v170, %v341
    %v423 = vmul.f32 %v171, %v341
    %v424 = vmul.f32 %v170, %v342
    %v425 = vmul.f32 %v171, %v342
    %v426 = vmul.f32 %v170, %v343
    %v427 = vmul.f32 %v171, %v343
    %v428 = vmul.f32 %v170, %v344
    %v429 = vmul.f32 %v171, %v344
    %v430 = vmul.f32 %v170, %v345
    %v431 = vmul.f32 %v171, %v345
    %v432 = vmul.f32 %v170, %v346
    %v433 = vmul.f32 %v171, %v346
    %v434 = vmul.f32 %v170, %v347
    %v435 = vmul.f32 %v171, %v347
    %v436 = vmul.f32 %v170, %v348
    %v437 = vmul.f32 %v171, %v348
    %v438 = vmul.f32 %v170, %v349
    %v439 = vmul.f32 %v171, %v349
    %v440 = vmul.f32 %v170, %v350
    %v441 = vmul.f32 %v171, %v350
    %v442 = vmul.f32 %v170, %v351
    %v443 = vmul.f32 %v171, %v351
    %v444 = vmul.f32 %v170, %v352
    %v445 = vmul.f32 %v171, %v352
    %v446 = vmul.f32 %v170, %v353
    %v447 = vmul.f32 %v171, %v353
    %v448 = vmul.f32 %v170, %v354
    %v449 = vmul.f32 %v171, %v354
    %v450 = vmul.f32 %v170, %v355
    %v451 = vmul.f32 %v171, %v355
    %v456 = vrot.slane %v56, 1
    %v457 = vrot.slane %v56, 2
    %v458 = vrot.slane %v56, 3
    %v459 = vrot.slane %v56, 4
    %v460 = vrot.slane %v56, 5
    %v461 = vrot.slane %v56, 6
    %v462 = vrot.slane %v56, 7
    %v463 = vrot.slane %v57, 1
    %v464 = vrot.slane %v57, 2
    %v465 = vrot.slane %v57, 3
    %v466 = vrot.slane %v57, 4
    %v467 = vrot.slane %v57, 5
    %v468 = vrot.slane %v57, 6
    %v469 = vrot.slane %v57, 7
    %v470 = vrot.slane %v64, 1
    %v471 = vrot.slane %v64, 2
    %v472 = vrot.slane %v64, 3
    %v473 = vrot.slane %v64, 4
    %v474 = vrot.slane %v64, 5
    %v475 = vrot.slane %v64, 6
    %v476 = vrot.slane %v64, 7
    %v477 = vrot.slane %v65, 1
    %v478 = vrot.slane %v65, 2
    %v479 = vrot.slane %v65, 3
    %v480 = vrot.slane %v65, 4
    %v481 = vrot.slane %v65, 5
    %v482 = vrot.slane %v65, 6
    %v483 = vrot.slane %v65, 7
    %v484 = vperm.slane %v56, 0
    %v485 = vperm.slane %v456, 0
    %v486 = vperm.slane %v457, 0
    %v487 = vperm.slane %v458, 0
    %v488 = vperm.slane %v459, 0
    %v489 = vperm.slane %v460, 0
    %v490 = vperm.slane %v461, 0
    %v491 = vperm.slane %v462, 0
    %v492 = vperm.slane %v57, 0
    %v493 = vperm.slane %v463, 0
    %v494 = vperm.slane %v464, 0
    %v495 = vperm.slane %v465, 0
    %v496 = vperm.slane %v466, 0
    %v497 = vperm.slane %v467, 0
    %v498 = vperm.slane %v468, 0
    %v499 = vperm.slane %v469, 0
    %v500 = vperm.slane %v64, 0
    %v501 = vperm.slane %v470, 0
    %v502 = vperm.slane %v471, 0
    %v503 = vperm.slane %v472, 0
    %v504 = vperm.slane %v473, 0
    %v505 = vperm.slane %v474, 0
    %v506 = vperm.slane %v475, 0
    %v507 = vperm.slane %v476, 0
    %v508 = vperm.slane %v65, 0
    %v509 = vperm.slane %v477, 0
    %v510 = vperm.slane %v478, 0
    %v511 = vperm.slane %v479, 0
    %v512 = vperm.slane %v480, 0
    %v513 = vperm.slane %v481, 0
    %v514 = vperm.slane %v482, 0
    %v515 = vperm.slane %v483, 0
    %v548 = vmul.f32 %v208, %v484
    %v549 = vmul.f32 %v209, %v484
    %v550 = vmul.f32 %v208, %v485
    %v551 = vmul.f32 %v209, %v485
    %v552 = vmul.f32 %v208, %v486
    %v553 = vmul.f32 %v209, %v486
    %v554 = vmul.f32 %v208, %v487
    %v555 = vmul.f32 %v209, %v487
    %v556 = vmul.f32 %v208, %v488
    %v557 = vmul.f32 %v209, %v488
    %v558 = vmul.f32 %v208, %v489
    %v559 = vmul.f32 %v209, %v489
    %v560 = vmul.f32 %v208, %v490
    %v561 = vmul.f32 %v209, %v490
    %v562 = vmul.f32 %v208, %v491
    %v563 = vmul.f32 %v209, %v491
    %v564 = vmul.f32 %v208, %v492
    %v565 = vmul.f32 %v209, %v492
    %v566 = vmul.f32 %v208, %v493
    %v567 = vmul.f32 %v209, %v493
    %v568 = vmul.f32 %v208, %v494
    %v569 = vmul.f32 %v209, %v494
    %v570 = vmul.f32 %v208, %v495
    %v571 = vmul.f32 %v209, %v495
    %v572 = vmul.f32 %v208, %v496
    %v573 = vmul.f32 %v209, %v496
    %v574 = vmul.f32 %v208, %v497
    %v575 = vmul.f32 %v209, %v497
    %v576 = vmul.f32 %v208, %v498
    %v577 = vmul.f32 %v209, %v498
    %v578 = vmul.f32 %v208, %v499
    %v579 = vmul.f32 %v209, %v499
    %v580 = vmul.f32 %v210, %v500
    %v581 = vmul.f32 %v211, %v500
    %v582 = vmul.f32 %v210, %v501
    %v583 = vmul.f32 %v211, %v501
    %v584 = vmul.f32 %v210, %v502
    %v585 = vmul.f32 %v211, %v502
    %v586 = vmul.f32 %v210, %v503
    %v587 = vmul.f32 %v211, %v503
    %v588 = vmul.f32 %v210, %v504
    %v589 = vmul.f32 %v211, %v504
    %v590 = vmul.f32 %v210, %v505
    %v591 = vmul.f32 %v211, %v505
    %v592 = vmul.f32 %v210, %v506
    %v593 = vmul.f32 %v211, %v506
    %v594 = vmul.f32 %v210, %v507
    %v595 = vmul.f32 %v211, %v507
    %v596 = vmul.f32 %v210, %v508
    %v597 = vmul.f32 %v211, %v508
    %v598 = vmul.f32 %v210, %v509
    %v599 = vmul.f32 %v211, %v509
    %v600 = vmul.f32 %v210, %v510
    %v601 = vmul.f32 %v211, %v510
    %v602 = vmul.f32 %v210, %v511
    %v603 = vmul.f32 %v211, %v511
    %v604 = vmul.f32 %v210, %v512
    %v605 = vmul.f32 %v211, %v512
    %v606 = vmul.f32 %v210, %v513
    %v607 = vmul.f32 %v211, %v513
    %v608 = vmul.f32 %v210, %v514
    %v609 = vmul.f32 %v211, %v514
    %v610 = vmul.f32 %v210, %v515
    %v611 = vmul.f32 %v211, %v515
    %v612 = vadd.f32 %v388, %v548
    %v613 = vadd.f32 %v389, %v549
    %v614 = vadd.f32 %v390, %v550
    %v615 = vadd.f32 %v391, %v551
    %v616 = vadd.f32 %v392, %v552
    %v617 = vadd.f32 %v393, %v553
    %v618 = vadd.f32 %v394, %v554
    %v619 = vadd.f32 %v395, %v555
    %v620 = vadd.f32 %v396, %v556
    %v621 = vadd.f32 %v397, %v557
    %v622 = vadd.f32 %v398, %v558
    %v623 = vadd.f32 %v399, %v559
    %v624 = vadd.f32 %v400, %v560
    %v625 = vadd.f32 %v401, %v561
    %v626 = vadd.f32 %v402, %v562
    %v627 = vadd.f32 %v403, %v563
    %v628 = vadd.f32 %v404, %v564
    %v629 = vadd.f32 %v405, %v565
    %v630 = vadd.f32 %v406, %v566
    %v631 = vadd.f32 %v407, %v567
    %v632 = vadd.f32 %v408, %v568
    %v633 = vadd.f32 %v409, %v569
    %v634 = vadd.f32 %v410, %v570
    %v635 = vadd.f32 %v411, %v571
    %v636 = vadd.f32 %v412, %v572
    %v637 = vadd.f32 %v413, %v573
    %v638 = vadd.f32 %v414, %v574
    %v639 = vadd.f32 %v415, %v575
    %v640 = vadd.f32 %v416, %v576
    %v641 = vadd.f32 %v417, %v577
    %v642 = vadd.f32 %v418, %v578
    %v643 = vadd.f32 %v419, %v579
    %v644 = vadd.f32 %v420, %v580
    %v645 = vadd.f32 %v421, %v581
    %v646 = vadd.f32 %v422, %v582
    %v647 = vadd.f32 %v423, %v583
    %v648 = vadd.f32 %v424, %v584
    %v649 = vadd.f32 %v425, %v585
    %v650 = vadd.f32 %v426, %v586
    %v651 = vadd.f32 %v427, %v587
    %v652 = vadd.f32 %v428, %v588
    %v653 = vadd.f32 %v429, %v589
    %v654 = vadd.f32 %v430, %v590
    %v655 = vadd.f32 %v431, %v591
    %v656 = vadd.f32 %v432, %v592
    %v657 = vadd.f32 %v433, %v593
    %v658 = vadd.f32 %v434, %v594
    %v659 = vadd.f32 %v435, %v595
    %v660 = vadd.f32 %v436, %v596
    %v661 = vadd.f32 %v437, %v597
    %v662 = vadd.f32 %v438, %v598
    %v663 = vadd.f32 %v439, %v599
    %v664 = vadd.f32 %v440, %v600
    %v665 = vadd.f32 %v441, %v601
    %v666 = vadd.f32 %v442, %v602
    %v667 = vadd.f32 %v443, %v603
    %v668 = vadd.f32 %v444, %v604
    %v669 = vadd.f32 %v445, %v605
    %v670 = vadd.f32 %v446, %v606
    %v671 = vadd.f32 %v447, %v607
    %v672 = vadd.f32 %v448, %v608
    %v673 = vadd.f32 %v449, %v609
    %v674 = vadd.f32 %v450, %v610
    %v675 = vadd.f32 %v451, %v611
    %v680 = vrot.slane %v58, 1
    %v681 = vrot.slane %v58, 2
    %v682 = vrot.slane %v58, 3
    %v683 = vrot.slane %v58, 4
    %v684 = vrot.slane %v58, 5
    %v685 = vrot.slane %v58, 6
    %v686 = vrot.slane %v58, 7
    %v687 = vrot.slane %v59, 1
    %v688 = vrot.slane %v59, 2
    %v689 = vrot.slane %v59, 3
    %v690 = vrot.slane %v59, 4
    %v691 = vrot.slane %v59, 5
    %v692 = vrot.slane %v59, 6
    %v693 = vrot.slane %v59, 7
    %v694 = vrot.slane %v66, 1
    %v695 = vrot.slane %v66, 2
    %v696 = vrot.slane %v66, 3
    %v697 = vrot.slane %v66, 4
    %v698 = vrot.slane %v66, 5
    %v699 = vrot.slane %v66, 6
    %v700 = vrot.slane %v66, 7
    %v701 = vrot.slane %v67, 1
    %v702 = vrot.slane %v67, 2
    %v703 = vrot.slane %v67, 3
    %v704 = vrot.slane %v67, 4
    %v705 = vrot.slane %v67, 5
    %v706 = vrot.slane %v67, 6
    %v707 = vrot.slane %v67, 7
    %v708 = vperm.slane %v58, 0
    %v709 = vperm.slane %v680, 0
    %v710 = vperm.slane %v681, 0
    %v711 = vperm.slane %v682, 0
    %v712 = vperm.slane %v683, 0
    %v713 = vperm.slane %v684, 0
    %v714 = vperm.slane %v685, 0
    %v715 = vperm.slane %v686, 0
    %v716 = vperm.slane %v59, 0
    %v717 = vperm.slane %v687, 0
    %v718 = vperm.slane %v688, 0
    %v719 = vperm.slane %v689, 0
    %v720 = vperm.slane %v690, 0
    %v721 = vperm.slane %v691, 0
    %v722 = vperm.slane %v692, 0
    %v723 = vperm.slane %v693, 0
    %v724 = vperm.slane %v66, 0
    %v725 = vperm.slane %v694, 0
    %v726 = vperm.slane %v695, 0
    %v727 = vperm.slane %v696, 0
    %v728 = vperm.slane %v697, 0
    %v729 = vperm.slane %v698, 0
    %v730 = vperm.slane %v699, 0
    %v731 = vperm.slane %v700, 0
    %v732 = vperm.slane %v67, 0
    %v733 = vperm.slane %v701, 0
    %v734 = vperm.slane %v702, 0
    %v735 = vperm.slane %v703, 0
    %v736 = vperm.slane %v704, 0
    %v737 = vperm.slane %v705, 0
    %v738 = vperm.slane %v706, 0
    %v739 = vperm.slane %v707, 0
    %v772 = vmul.f32 %v248, %v708
    %v773 = vmul.f32 %v249, %v708
    %v774 = vmul.f32 %v248, %v709
    %v775 = vmul.f32 %v249, %v709
    %v776 = vmul.f32 %v248, %v710
    %v777 = vmul.f32 %v249, %v710
    %v778 = vmul.f32 %v248, %v711
    %v779 = vmul.f32 %v249, %v711
    %v780 = vmul.f32 %v248, %v712
    %v781 = vmul.f32 %v249, %v712
    %v782 = vmul.f32 %v248, %v713
    %v783 = vmul.f32 %v249, %v713
    %v784 = vmul.f32 %v248, %v714
    %v785 = vmul.f32 %v249, %v714
    %v786 = vmul.f32 %v248, %v715
    %v787 = vmul.f32 %v249, %v715
    %v788 = vmul.f32 %v248, %v716
    %v789 = vmul.f32 %v249, %v716
    %v790 = vmul.f32 %v248, %v717
    %v791 = vmul.f32 %v249, %v717
    %v792 = vmul.f32 %v248, %v718
    %v793 = vmul.f32 %v249, %v718
    %v794 = vmul.f32 %v248, %v719
    %v795 = vmul.f32 %v249, %v719
    %v796 = vmul.f32 %v248, %v720
    %v797 = vmul.f32 %v249, %v720
    %v798 = vmul.f32 %v248, %v721
    %v799 = vmul.f32 %v249, %v721
    %v800 = vmul.f32 %v248, %v722
    %v801 = vmul.f32 %v249, %v722
    %v802 = vmul.f32 %v248, %v723
    %v803 = vmul.f32 %v249, %v723
    %v804 = vmul.f32 %v250, %v724
    %v805 = vmul.f32 %v251, %v724
    %v806 = vmul.f32 %v250, %v725
    %v807 = vmul.f32 %v251, %v725
    %v808 = vmul.f32 %v250, %v726
    %v809 = vmul.f32 %v251, %v726
    %v810 = vmul.f32 %v250, %v727
    %v811 = vmul.f32 %v251, %v727
    %v812 = vmul.f32 %v250, %v728
    %v813 = vmul.f32 %v251, %v728
    %v814 = vmul.f32 %v250, %v729
    %v815 = vmul.f32 %v251, %v729
    %v816 = vmul.f32 %v250, %v730
    %v817 = vmul.f32 %v251, %v730
    %v818 = vmul.f32 %v250, %v731
    %v819 = vmul.f32 %v251, %v731
    %v820 = vmul.f32 %v250, %v732
    %v821 = vmul.f32 %v251, %v732
    %v822 = vmul.f32 %v250, %v733
    %v823 = vmul.f32 %v251, %v733
    %v824 = vmul.f32 %v250, %v734
    %v825 = vmul.f32 %v251, %v734
    %v826 = vmul.f32 %v250, %v735
    %v827 = vmul.f32 %v251, %v735
    %v828 = vmul.f32 %v250, %v736
    %v829 = vmul.f32 %v251, %v736
    %v830 = vmul.f32 %v250, %v737
    %v831 = vmul.f32 %v251, %v737
    %v832 = vmul.f32 %v250, %v738
    %v833 = vmul.f32 %v251, %v738
    %v834 = vmul.f32 %v250, %v739
    %v835 = vmul.f32 %v251, %v739
    %v836 = vadd.f32 %v612, %v772
    %v837 = vadd.f32 %v613, %v773
    %v838 = vadd.f32 %v614, %v774
    %v839 = vadd.f32 %v615, %v775
    %v840 = vadd.f32 %v616, %v776
    %v841 = vadd.f32 %v617, %v777
    %v842 = vadd.f32 %v618, %v778
    %v843 = vadd.f32 %v619, %v779
    %v844 = vadd.f32 %v620, %v780
    %v845 = vadd.f32 %v621, %v781
    %v846 = vadd.f32 %v622, %v782
    %v847 = vadd.f32 %v623, %v783
    %v848 = vadd.f32 %v624, %v784
    %v849 = vadd.f32 %v625, %v785
    %v850 = vadd.f32 %v626, %v786
    %v851 = vadd.f32 %v627, %v787
    %v852 = vadd.f32 %v628, %v788
    %v853 = vadd.f32 %v629, %v789
    %v854 = vadd.f32 %v630, %v790
    %v855 = vadd.f32 %v631, %v791
    %v856 = vadd.f32 %v632, %v792
    %v857 = vadd.f32 %v633, %v793
    %v858 = vadd.f32 %v634, %v794
    %v859 = vadd.f32 %v635, %v795
    %v860 = vadd.f32 %v636, %v796
    %v861 = vadd.f32 %v637, %v797
    %v862 = vadd.f32 %v638, %v798
    %v863 = vadd.f32 %v639, %v799
    %v864 = vadd.f32 %v640, %v800
    %v865 = vadd.f32 %v641, %v801
    %v866 = vadd.f32 %v642, %v802
    %v867 = vadd.f32 %v643, %v803
    %v868 = vadd.f32 %v644, %v804
    %v869 = vadd.f32 %v645, %v805
    %v870 = vadd.f32 %v646, %v806
    %v871 = vadd.f32 %v647, %v807
    %v872 = vadd.f32 %v648, %v808
    %v873 = vadd.f32 %v649, %v809
    %v874 = vadd.f32 %v650, %v810
    %v875 = vadd.f32 %v651, %v811
    %v876 = vadd.f32 %v652, %v812
    %v877 = vadd.f32 %v653, %v813
    %v878 = vadd.f32 %v654, %v814
    %v879 = vadd.f32 %v655, %v815
    %v880 = vadd.f32 %v656, %v816
    %v881 = vadd.f32 %v657, %v817
    %v882 = vadd.f32 %v658, %v818
    %v883 = vadd.f32 %v659, %v819
    %v884 = vadd.f32 %v660, %v820
    %v885 = vadd.f32 %v661, %v821
    %v886 = vadd.f32 %v662, %v822
    %v887 = vadd.f32 %v663, %v823
    %v888 = vadd.f32 %v664, %v824
    %v889 = vadd.f32 %v665, %v825
    %v890 = vadd.f32 %v666, %v826
    %v891 = vadd.f32 %v667, %v827
    %v892 = vadd.f32 %v668, %v828
    %v893 = vadd.f32 %v669, %v829
    %v894 = vadd.f32 %v670, %v830
    %v895 = vadd.f32 %v671, %v831
    %v896 = vadd.f32 %v672, %v832
    %v897 = vadd.f32 %v673, %v833
    %v898 = vadd.f32 %v674, %v834
    %v899 = vadd.f32 %v675, %v835
    %v904 = vrot.slane %v60, 1
    %v905 = vrot.slane %v60, 2
    %v906 = vrot.slane %v60, 3
    %v907 = vrot.slane %v60, 4
    %v908 = vrot.slane %v60, 5
    %v909 = vrot.slane %v60, 6
    %v910 = vrot.slane %v60, 7
    %v911 = vrot.slane %v61, 1
    %v912 = vrot.slane %v61, 2
    %v913 = vrot.slane %v61, 3
    %v914 = vrot.slane %v61, 4
    %v915 = vrot.slane %v61, 5
    %v916 = vrot.slane %v61, 6
    %v917 = vrot.slane %v61, 7
    %v918 = vrot.slane %v68, 1
    %v919 = vrot.slane %v68, 2
    %v920 = vrot.slane %v68, 3
    %v921 = vrot.slane %v68, 4
    %v922 = vrot.slane %v68, 5
    %v923 = vrot.slane %v68, 6
    %v924 = vrot.slane %v68, 7
    %v925 = vrot.slane %v69, 1
    %v926 = vrot.slane %v69, 2
    %v927 = vrot.slane %v69, 3
    %v928 = vrot.slane %v69, 4
    %v929 = vrot.slane %v69, 5
    %v930 = vrot.slane %v69, 6
    %v931 = vrot.slane %v69, 7
    %v932 = vperm.slane %v60, 0
    %v933 = vperm.slane %v904, 0
    %v934 = vperm.slane %v905, 0
    %v935 = vperm.slane %v906, 0
    %v936 = vperm.slane %v907, 0
    %v937 = vperm.slane %v908, 0
    %v938 = vperm.slane %v909, 0
    %v939 = vperm.slane %v910, 0
    %v940 = vperm.slane %v61, 0
    %v941 = vperm.slane %v911, 0
    %v942 = vperm.slane %v912, 0
    %v943 = vperm.slane %v913, 0
    %v944 = vperm.slane %v914, 0
    %v945 = vperm.slane %v915, 0
    %v946 = vperm.slane %v916, 0
    %v947 = vperm.slane %v917, 0
    %v948 = vperm.slane %v68, 0
    %v949 = vperm.slane %v918, 0
    %v950 = vperm.slane %v919, 0
    %v951 = vperm.slane %v920, 0
    %v952 = vperm.slane %v921, 0
    %v953 = vperm.slane %v922, 0
    %v954 = vperm.slane %v923, 0
    %v955 = vperm.slane %v924, 0
    %v956 = vperm.slane %v69, 0
    %v957 = vperm.slane %v925, 0
    %v958 = vperm.slane %v926, 0
    %v959 = vperm.slane %v927, 0
    %v960 = vperm.slane %v928, 0
    %v961 = vperm.slane %v929, 0
    %v962 = vperm.slane %v930, 0
    %v963 = vperm.slane %v931, 0
    %v996 = vmul.f32 %v288, %v932
    %v997 = vmul.f32 %v289, %v932
    %v998 = vmul.f32 %v288, %v933
    %v999 = vmul.f32 %v289, %v933
    %v1000 = vmul.f32 %v288, %v934
    %v1001 = vmul.f32 %v289, %v934
    %v1002 = vmul.f32 %v288, %v935
    %v1003 = vmul.f32 %v289, %v935
    %v1004 = vmul.f32 %v288, %v936
    %v1005 = vmul.f32 %v289, %v936
    %v1006 = vmul.f32 %v288, %v937
    %v1007 = vmul.f32 %v289, %v937
    %v1008 = vmul.f32 %v288, %v938
    %v1009 = vmul.f32 %v289, %v938
    %v1010 = vmul.f32 %v288, %v939
    %v1011 = vmul.f32 %v289, %v939
    %v1012 = vmul.f32 %v288, %v940
    %v1013 = vmul.f32 %v289, %v940
    %v1014 = vmul.f32 %v288, %v941
    %v1015 = vmul.f32 %v289, %v941
    %v1016 = vmul.f32 %v288, %v942
    %v1017 = vmul.f32 %v289, %v942
    %v1018 = vmul.f32 %v288, %v943
    %v1019 = vmul.f32 %v289, %v943
    %v1020 = vmul.f32 %v288, %v944
    %v1021 = vmul.f32 %v289, %v944
    %v1022 = vmul.f32 %v288, %v945
    %v1023 = vmul.f32 %v289, %v945
    %v1024 = vmul.f32 %v288, %v946
    %v1025 = vmul.f32 %v289, %v946
    %v1026 = vmul.f32 %v288, %v947
    %v1027 = vmul.f32 %v289, %v947
    %v1028 = vmul.f32 %v290, %v948
    %v1029 = vmul.f32 %v291, %v948
    %v1030 = vmul.f32 %v290, %v949
    %v1031 = vmul.f32 %v291, %v949
    %v1032 = vmul.f32 %v290, %v950
    %v1033 = vmul.f32 %v291, %v950
    %v1034 = vmul.f32 %v290, %v951
    %v1035 = vmul.f32 %v291, %v951
    %v1036 = vmul.f32 %v290, %v952
    %v1037 = vmul.f32 %v291, %v952
    %v1038 = vmul.f32 %v290, %v953
    %v1039 = vmul.f32 %v291, %v953
    %v1040 = vmul.f32 %v290, %v954
    %v1041 = vmul.f32 %v291, %v954
    %v1042 = vmul.f32 %v290, %v955
    %v1043 = vmul.f32 %v291, %v955
    %v1044 = vmul.f32 %v290, %v956
    %v1045 = vmul.f32 %v291, %v956
    %v1046 = vmul.f32 %v290, %v957
    %v1047 = vmul.f32 %v291, %v957
    %v1048 = vmul.f32 %v290, %v958
    %v1049 = vmul.f32 %v291, %v958
    %v1050 = vmul.f32 %v290, %v959
    %v1051 = vmul.f32 %v291, %v959
    %v1052 = vmul.f32 %v290, %v960
    %v1053 = vmul.f32 %v291, %v960
    %v1054 = vmul.f32 %v290, %v961
    %v1055 = vmul.f32 %v291, %v961
    %v1056 = vmul.f32 %v290, %v962
    %v1057 = vmul.f32 %v291, %v962
    %v1058 = vmul.f32 %v290, %v963
    %v1059 = vmul.f32 %v291, %v963
    %v1060 = vadd.f32 %v836, %v996
    %v1061 = vadd.f32 %v837, %v997
    %v1062 = vadd.f32 %v838, %v998
    %v1063 = vadd.f32 %v839, %v999
    %v1064 = vadd.f32 %v840, %v1000
    %v1065 = vadd.f32 %v841, %v1001
    %v1066 = vadd.f32 %v842, %v1002
    %v1067 = vadd.f32 %v843, %v1003
    %v1068 = vadd.f32 %v844, %v1004
    %v1069 = vadd.f32 %v845, %v1005
    %v1070 = vadd.f32 %v846, %v1006
    %v1071 = vadd.f32 %v847, %v1007
    %v1072 = vadd.f32 %v848, %v1008
    %v1073 = vadd.f32 %v849, %v1009
    %v1074 = vadd.f32 %v850, %v1010
    %v1075 = vadd.f32 %v851, %v1011
    %v1076 = vadd.f32 %v852, %v1012
    %v1077 = vadd.f32 %v853, %v1013
    %v1078 = vadd.f32 %v854, %v1014
    %v1079 = vadd.f32 %v855, %v1015
    %v1080 = vadd.f32 %v856, %v1016
    %v1081 = vadd.f32 %v857, %v1017
    %v1082 = vadd.f32 %v858, %v1018
    %v1083 = vadd.f32 %v859, %v1019
    %v1084 = vadd.f32 %v860, %v1020
    %v1085 = vadd.f32 %v861, %v1021
    %v1086 = vadd.f32 %v862, %v1022
    %v1087 = vadd.f32 %v863, %v1023
    %v1088 = vadd.f32 %v864, %v1024
    %v1089 = vadd.f32 %v865, %v1025
    %v1090 = vadd.f32 %v866, %v1026
    %v1091 = vadd.f32 %v867, %v1027
    %v1092 = vadd.f32 %v868, %v1028
    %v1093 = vadd.f32 %v869, %v1029
    %v1094 = vadd.f32 %v870, %v1030
    %v1095 = vadd.f32 %v871, %v1031
    %v1096 = vadd.f32 %v872, %v1032
    %v1097 = vadd.f32 %v873, %v1033
    %v1098 = vadd.f32 %v874, %v1034
    %v1099 = vadd.f32 %v875, %v1035
    %v1100 = vadd.f32 %v876, %v1036
    %v1101 = vadd.f32 %v877, %v1037
    %v1102 = vadd.f32 %v878, %v1038
    %v1103 = vadd.f32 %v879, %v1039
    %v1104 = vadd.f32 %v880, %v1040
    %v1105 = vadd.f32 %v881, %v1041
    %v1106 = vadd.f32 %v882, %v1042
    %v1107 = vadd.f32 %v883, %v1043
    %v1108 = vadd.f32 %v884, %v1044
    %v1109 = vadd.f32 %v885, %v1045
    %v1110 = vadd.f32 %v886, %v1046
    %v1111 = vadd.f32 %v887, %v1047
    %v1112 = vadd.f32 %v888, %v1048
    %v1113 = vadd.f32 %v889, %v1049
    %v1114 = vadd.f32 %v890, %v1050
    %v1115 = vadd.f32 %v891, %v1051
    %v1116 = vadd.f32 %v892, %v1052
    %v1117 = vadd.f32 %v893, %v1053
    %v1118 = vadd.f32 %v894, %v1054
    %v1119 = vadd.f32 %v895, %v1055
    %v1120 = vadd.f32 %v896, %v1056
    %v1121 = vadd.f32 %v897, %v1057
    %v1122 = vadd.f32 %v898, %v1058
    %v1123 = vadd.f32 %v899, %v1059
    %vm1124 = vcmask 130048
    %v1125 = vsel %vm1124, %v1060, -inf
    %v1126 = vsel %vm1124, %v1062, -inf
    %v1127 = vmax.f32 %v1125, %v1126
    %v1128 = vsel %vm1124, %v1064, -inf
    %v1129 = vmax.f32 %v1127, %v1128
    %v1130 = vsel %vm1124, %v1066, -inf
    %v1131 = vmax.f32 %v1129, %v1130
    %v1132 = vsel %vm1124, %v1068, -inf
    %v1133 = vmax.f32 %v1131, %v1132
    %v1134 = vsel %vm1124, %v1070, -inf
    %v1135 = vmax.f32 %v1133, %v1134
    %v1136 = vsel %vm1124, %v1072, -inf
    %v1137 = vmax.f32 %v1135, %v1136
    %v1138 = vsel %vm1124, %v1074, -inf
    %v1139 = vmax.f32 %v1137, %v1138
    %v1140 = vsel %vm1124, %v1076, -inf
    %v1141 = vmax.f32 %v1139, %v1140
    %v1142 = vsel %vm1124, %v1078, -inf
    %v1143 = vmax.f32 %v1141, %v1142
    %v1144 = vsel %vm1124, %v1080, -inf
    %v1145 = vmax.f32 %v1143, %v1144
    %v1146 = vsel %vm1124, %v1082, -inf
    %v1147 = vmax.f32 %v1145, %v1146
    %v1148 = vsel %vm1124, %v1084, -inf
    %v1149 = vmax.f32 %v1147, %v1148
    %v1150 = vsel %vm1124, %v1086, -inf
    %v1151 = vmax.f32 %v1149, %v1150
    %v1152 = vsel %vm1124, %v1088, -inf
    %v1153 = vmax.f32 %v1151, %v1152
    %v1154 = vsel %vm1124, %v1090, -inf
    %v1155 = vmax.f32 %v1153, %v1154
    %v1156 = vsel %vm1124, %v1061, -inf
    %v1157 = vsel %vm1124, %v1063, -inf
    %v1158 = vmax.f32 %v1156, %v1157
    %v1159 = vsel %vm1124, %v1065, -inf
    %v1160 = vmax.f32 %v1158, %v1159
    %v1161 = vsel %vm1124, %v1067, -inf
    %v1162 = vmax.f32 %v1160, %v1161
    %v1163 = vsel %vm1124, %v1069, -inf
    %v1164 = vmax.f32 %v1162, %v1163
    %v1165 = vsel %vm1124, %v1071, -inf
    %v1166 = vmax.f32 %v1164, %v1165
    %v1167 = vsel %vm1124, %v1073, -inf
    %v1168 = vmax.f32 %v1166, %v1167
    %v1169 = vsel %vm1124, %v1075, -inf
    %v1170 = vmax.f32 %v1168, %v1169
    %v1171 = vsel %vm1124, %v1077, -inf
    %v1172 = vmax.f32 %v1170, %v1171
    %v1173 = vsel %vm1124, %v1079, -inf
    %v1174 = vmax.f32 %v1172, %v1173
    %v1175 = vsel %vm1124, %v1081, -inf
    %v1176 = vmax.f32 %v1174, %v1175
    %v1177 = vsel %vm1124, %v1083, -inf
    %v1178 = vmax.f32 %v1176, %v1177
    %v1179 = vsel %vm1124, %v1085, -inf
    %v1180 = vmax.f32 %v1178, %v1179
    %v1181 = vsel %vm1124, %v1087, -inf
    %v1182 = vmax.f32 %v1180, %v1181
    %v1183 = vsel %vm1124, %v1089, -inf
    %v1184 = vmax.f32 %v1182, %v1183
    %v1185 = vsel %vm1124, %v1091, -inf
    %v1186 = vmax.f32 %v1184, %v1185
    %v1187 = vsel %vm1124, %v1092, -inf
    %v1188 = vsel %vm1124, %v1094, -inf
    %v1189 = vmax.f32 %v1187, %v1188
    %v1190 = vsel %vm1124, %v1096, -inf
    %v1191 = vmax.f32 %v1189, %v1190
    %v1192 = vsel %vm1124, %v1098, -inf
    %v1193 = vmax.f32 %v1191, %v1192
    %v1194 = vsel %vm1124, %v1100, -inf
    %v1195 = vmax.f32 %v1193, %v1194
    %v1196 = vsel %vm1124, %v1102, -inf
    %v1197 = vmax.f32 %v1195, %v1196
    %v1198 = vsel %vm1124, %v1104, -inf
    %v1199 = vmax.f32 %v1197, %v1198
    %v1200 = vsel %vm1124, %v1106, -inf
    %v1201 = vmax.f32 %v1199, %v1200
    %v1202 = vsel %vm1124, %v1108, -inf
    %v1203 = vmax.f32 %v1201, %v1202
    %v1204 = vsel %vm1124, %v1110, -inf
    %v1205 = vmax.f32 %v1203, %v1204
    %v1206 = vsel %vm1124, %v1112, -inf
    %v1207 = vmax.f32 %v1205, %v1206
    %v1208 = vsel %vm1124, %v1114, -inf
    %v1209 = vmax.f32 %v1207, %v1208
    %v1210 = vsel %vm1124, %v1116, -inf
    %v1211 = vmax.f32 %v1209, %v1210
    %v1212 = vsel %vm1124, %v1118, -inf
    %v1213 = vmax.f32 %v1211, %v1212
    %v1214 = vsel %vm1124, %v1120, -inf
    %v1215 = vmax.f32 %v1213, %v1214
    %v1216 = vsel %vm1124, %v1122, -inf
    %v1217 = vmax.f32 %v1215, %v1216
    %v1218 = vsel %vm1124, %v1093, -inf
    %v1219 = vsel %vm1124, %v1095, -inf
    %v1220 = vmax.f32 %v1218, %v1219
    %v1221 = vsel %vm1124, %v1097, -inf
    %v1222 = vmax.f32 %v1220, %v1221
    %v1223 = vsel %vm1124, %v1099, -inf
    %v1224 = vmax.f32 %v1222, %v1223
    %v1225 = vsel %vm1124, %v1101, -inf
    %v1226 = vmax.f32 %v1224, %v1225
    %v1227 = vsel %vm1124, %v1103, -inf
    %v1228 = vmax.f32 %v1226, %v1227
    %v1229 = vsel %vm1124, %v1105, -inf
    %v1230 = vmax.f32 %v1228, %v1229
    %v1231 = vsel %vm1124, %v1107, -inf
    %v1232 = vmax.f32 %v1230, %v1231
    %v1233 = vsel %vm1124, %v1109, -inf
    %v1234 = vmax.f32 %v1232, %v1233
    %v1235 = vsel %vm1124, %v1111, -inf
    %v1236 = vmax.f32 %v1234, %v1235
    %v1237 = vsel %vm1124, %v1113, -inf
    %v1238 = vmax.f32 %v1236, %v1237
    %v1239 = vsel %vm1124, %v1115, -inf
    %v1240 = vmax.f32 %v1238, %v1239
    %v1241 = vsel %vm1124, %v1117, -inf
    %v1242 = vmax.f32 %v1240, %v1241
    %v1243 = vsel %vm1124, %v1119, -inf
    %v1244 = vmax.f32 %v1242, %v1243
    %v1245 = vsel %vm1124, %v1121, -inf
    %v1246 = vmax.f32 %v1244, %v1245
    %v1247 = vsel %vm1124, %v1123, -inf
    %v1248 = vmax.f32 %v1246, %v1247
    %v1249 = vsub.f32 %v1060, %v1155
    %v1250 = vsub.f32 %v1061, %v1186
    %v1251 = vsub.f32 %v1062, %v1155
    %v1252 = vsub.f32 %v1063, %v1186
    %v1253 = vsub.f32 %v1064, %v1155
    %v1254 = vsub.f32 %v1065, %v1186
    %v1255 = vsub.f32 %v1066, %v1155
    %v1256 = vsub.f32 %v1067, %v1186
    %v1257 = vsub.f32 %v1068, %v1155
    %v1258 = vsub.f32 %v1069, %v1186
    %v1259 = vsub.f32 %v1070, %v1155
    %v1260 = vsub.f32 %v1071, %v1186
    %v1261 = vsub.f32 %v1072, %v1155
    %v1262 = vsub.f32 %v1073, %v1186
    %v1263 = vsub.f32 %v1074, %v1155
    %v1264 = vsub.f32 %v1075, %v1186
    %v1265 = vsub.f32 %v1076, %v1155
    %v1266 = vsub.f32 %v1077, %v1186
    %v1267 = vsub.f32 %v1078, %v1155
    %v1268 = vsub.f32 %v1079, %v1186
    %v1269 = vsub.f32 %v1080, %v1155
    %v1270 = vsub.f32 %v1081, %v1186
    %v1271 = vsub.f32 %v1082, %v1155
    %v1272 = vsub.f32 %v1083, %v1186
    %v1273 = vsub.f32 %v1084, %v1155
    %v1274 = vsub.f32 %v1085, %v1186
    %v1275 = vsub.f32 %v1086, %v1155
    %v1276 = vsub.f32 %v1087, %v1186
    %v1277 = vsub.f32 %v1088, %v1155
    %v1278 = vsub.f32 %v1089, %v1186
    %v1279 = vsub.f32 %v1090, %v1155
    %v1280 = vsub.f32 %v1091, %v1186
    %v1281 = vsub.f32 %v1092, %v1217
    %v1282 = vsub.f32 %v1093, %v1248
    %v1283 = vsub.f32 %v1094, %v1217
    %v1284 = vsub.f32 %v1095, %v1248
    %v1285 = vsub.f32 %v1096, %v1217
    %v1286 = vsub.f32 %v1097, %v1248
    %v1287 = vsub.f32 %v1098, %v1217
    %v1288 = vsub.f32 %v1099, %v1248
    %v1289 = vsub.f32 %v1100, %v1217
    %v1290 = vsub.f32 %v1101, %v1248
    %v1291 = vsub.f32 %v1102, %v1217
    %v1292 = vsub.f32 %v1103, %v1248
    %v1293 = vsub.f32 %v1104, %v1217
    %v1294 = vsub.f32 %v1105, %v1248
    %v1295 = vsub.f32 %v1106, %v1217
    %v1296 = vsub.f32 %v1107, %v1248
    %v1297 = vsub.f32 %v1108, %v1217
    %v1298 = vsub.f32 %v1109, %v1248
    %v1299 = vsub.f32 %v1110, %v1217
    %v1300 = vsub.f32 %v1111, %v1248
    %v1301 = vsub.f32 %v1112, %v1217
    %v1302 = vsub.f32 %v1113, %v1248
    %v1303 = vsub.f32 %v1114, %v1217
    %v1304 = vsub.f32 %v1115, %v1248
    %v1305 = vsub.f32 %v1116, %v1217
    %v1306 = vsub.f32 %v1117, %v1248
    %v1307 = vsub.f32 %v1118, %v1217
    %v1308 = vsub.f32 %v1119, %v1248
    %v1309 = vsub.f32 %v1120, %v1217
    %v1310 = vsub.f32 %v1121, %v1248
    %v1311 = vsub.f32 %v1122, %v1217
    %v1312 = vsub.f32 %v1123, %v1248
    %v1313 = vmul.f32 %v1249, 1.442695
    %v1314 = vpow.pop %v1313
    %v1315 = vmul.f32 %v1250, 1.442695
    %v1316 = vpow.pop %v1315
    %v1317 = vmul.f32 %v1251, 1.442695
    %v1318 = vpow.pop %v1317
    %v1319 = vmul.f32 %v1252, 1.442695
    %v1320 = vpow.pop %v1319
    %v1321 = vmul.f32 %v1253, 1.442695
    %v1322 = vpow.pop %v1321
    %v1323 = vmul.f32 %v1254, 1.442695
    %v1324 = vpow.pop %v1323
    %v1325 = vmul.f32 %v1255, 1.442695
    %v1326 = vpow.pop %v1325
    %v1327 = vmul.f32 %v1256, 1.442695
    %v1328 = vpow.pop %v1327
    %v1329 = vmul.f32 %v1257, 1.442695
    %v1330 = vpow.pop %v1329
    %v1331 = vmul.f32 %v1258, 1.442695
    %v1332 = vpow.pop %v1331
    %v1333 = vmul.f32 %v1259, 1.442695
    %v1334 = vpow.pop %v1333
    %v1335 = vmul.f32 %v1260, 1.442695
    %v1336 = vpow.pop %v1335
    %v1337 = vmul.f32 %v1261, 1.442695
    %v1338 = vpow.pop %v1337
    %v1339 = vmul.f32 %v1262, 1.442695
    %v1340 = vpow.pop %v1339
    %v1341 = vmul.f32 %v1263, 1.442695
    %v1342 = vpow.pop %v1341
    %v1343 = vmul.f32 %v1264, 1.442695
    %v1344 = vpow.pop %v1343
    %v1345 = vmul.f32 %v1265, 1.442695
    %v1346 = vpow.pop %v1345
    %v1347 = vmul.f32 %v1266, 1.442695
    %v1348 = vpow.pop %v1347
    %v1349 = vmul.f32 %v1267, 1.442695
    %v1350 = vpow.pop %v1349
    %v1351 = vmul.f32 %v1268, 1.442695
    %v1352 = vpow.pop %v1351
    %v1353 = vmul.f32 %v1269, 1.442695
    %v1354 = vpow.pop %v1353
    %v1355 = vmul.f32 %v1270, 1.442695
    %v1356 = vpow.pop %v1355
    %v1357 = vmul.f32 %v1271, 1.442695
    %v1358 = vpow.pop %v1357
    %v1359 = vmul.f32 %v1272, 1.442695
    %v1360 = vpow.pop %v1359
    %v1361 = vmul.f32 %v1273, 1.442695
    %v1362 = vpow.pop %v1361
    %v1363 = vmul.f32 %v1274, 1.442695
    %v1364 = vpow.pop %v1363
    %v1365 = vmul.f32 %v1275, 1.442695
    %v1366 = vpow.pop %v1365
    %v1367 = vmul.f32 %v1276, 1.442695
    %v1368 = vpow.pop %v1367
    %v1369 = vmul.f32 %v1277, 1.442695
    %v1370 = vpow.pop %v1369
    %v1371 = vmul.f32 %v1278, 1.442695
    %v1372 = vpow.pop %v1371
    %v1373 = vmul.f32 %v1279, 1.442695
    %v1374 = vpow.pop %v1373
    %v1375 = vmul.f32 %v1280, 1.442695
    %v1376 = vpow.pop %v1375
    %v1377 = vmul.f32 %v1281, 1.442695
    %v1378 = vpow.pop %v1377
    %v1379 = vmul.f32 %v1282, 1.442695
    %v1380 = vpow.pop %v1379
    %v1381 = vmul.f32 %v1283, 1.442695
    %v1382 = vpow.pop %v1381
    %v1383 = vmul.f32 %v1284, 1.442695
    %v1384 = vpow.pop %v1383
    %v1385 = vmul.f32 %v1285, 1.442695
    %v1386 = vpow.pop %v1385
    %v1387 = vmul.f32 %v1286, 1.442695
    %v1388 = vpow.pop %v1387
    %v1389 = vmul.f32 %v1287, 1.442695
    %v1390 = vpow.pop %v1389
    %v1391 = vmul.f32 %v1288, 1.442695
    %v1392 = vpow.pop %v1391
    %v1393 = vmul.f32 %v1289, 1.442695
    %v1394 = vpow.pop %v1393
    %v1395 = vmul.f32 %v1290, 1.442695
    %v1396 = vpow.pop %v1395
    %v1397 = vmul.f32 %v1291, 1.442695
    %v1398 = vpow.pop %v1397
    %v1399 = vmul.f32 %v1292, 1.442695
    %v1400 = vpow.pop %v1399
    %v1401 = vmul.f32 %v1293, 1.442695
    %v1402 = vpow.pop %v1401
    %v1403 = vmul.f32 %v1294, 1.442695
    %v1404 = vpow.pop %v1403
    %v1405 = vmul.f32 %v1295, 1.442695
    %v1406 = vpow.pop %v1405
    %v1407 = vmul.f32 %v1296, 1.442695
    %v1408 = vpow.pop %v1407
    %v1409 = vmul.f32 %v1297, 1.442695
    %v1410 = vpow.pop %v1409
    %v1411 = vmul.f32 %v1298, 1.442695
    %v1412 = vpow.pop %v1411
    %v1413 = vmul.f32 %v1299, 1.442695
    %v1414 = vpow.pop %v1413
    %v1415 = vmul.f32 %v1300, 1.442695
    %v1416 = vpow.pop %v1415
    %v1417 = vmul.f32 %v1301, 1.442695
    %v1418 = vpow.pop %v1417
    %v1419 = vmul.f32 %v1302, 1.442695
    %v1420 = vpow.pop %v1419
    %v1421 = vmul.f32 %v1303, 1.442695
    %v1422 = vpow.pop %v1421
    %v1423 = vmul.f32 %v1304, 1.442695
    %v1424 = vpow.pop %v1423
    %v1425 = vmul.f32 %v1305, 1.442695
    %v1426 = vpow.pop %v1425
    %v1427 = vmul.f32 %v1306, 1.442695
    %v1428 = vpow.pop %v1427
    %v1429 = vmul.f32 %v1307, 1.442695
    %v1430 = vpow.pop %v1429
    %v1431 = vmul.f32 %v1308, 1.442695
    %v1432 = vpow.pop %v1431
    %v1433 = vmul.f32 %v1309, 1.442695
    %v1434 = vpow.pop %v1433
    %v1435 = vmul.f32 %v1310, 1.442695
    %v1436 = vpow.pop %v1435
    %v1437 = vmul.f32 %v1311, 1.442695
    %v1438 = vpow.pop %v1437
    %v1439 = vmul.f32 %v1312, 1.442695
    %v1440 = vpow.pop %v1439
    %v1441 = vsel %vm1124, %v1314, 0.0
    %v1442 = vsel %vm1124, %v1318, 0.0
    %v1443 = vadd.f32 %v1441, %v1442
    %v1444 = vsel %vm1124, %v1322, 0.0
    %v1445 = vadd.f32 %v1443, %v1444
    %v1446 = vsel %vm1124, %v1326, 0.0
    %v1447 = vadd.f32 %v1445, %v1446
    %v1448 = vsel %vm1124, %v1330, 0.0
    %v1449 = vadd.f32 %v1447, %v1448
    %v1450 = vsel %vm1124, %v1334, 0.0
    %v1451 = vadd.f32 %v1449, %v1450
    %v1452 = vsel %vm1124, %v1338, 0.0
    %v1453 = vadd.f32 %v1451, %v1452
    %v1454 = vsel %vm1124, %v1342, 0.0
    %v1455 = vadd.f32 %v1453, %v1454
    %v1456 = vsel %vm1124, %v1346, 0.0
    %v1457 = vadd.f32 %v1455, %v1456
    %v1458 = vsel %vm1124, %v1350, 0.0
    %v1459 = vadd.f32 %v1457, %v1458
    %v1460 = vsel %vm1124, %v1354, 0.0
    %v1461 = vadd.f32 %v1459, %v1460
    %v1462 = vsel %vm1124, %v1358, 0.0
    %v1463 = vadd.f32 %v1461, %v1462
    %v1464 = vsel %vm1124, %v1362, 0.0
    %v1465 = vadd.f32 %v1463, %v1464
    %v1466 = vsel %vm1124, %v1366, 0.0
    %v1467 = vadd.f32 %v1465, %v1466
    %v1468 = vsel %vm1124, %v1370, 0.0
    %v1469 = vadd.f32 %v1467, %v1468
    %v1470 = vsel %vm1124, %v1374, 0.0
    %v1471 = vadd.f32 %v1469, %v1470
    %v1472 = vsel %vm1124, %v1316, 0.0
    %v1473 = vsel %vm1124, %v1320, 0.0
    %v1474 = vadd.f32 %v1472, %v1473
    %v1475 = vsel %vm1124, %v1324, 0.0
    %v1476 = vadd.f32 %v1474, %v1475
    %v1477 = vsel %vm1124, %v1328, 0.0
    %v1478 = vadd.f32 %v1476, %v1477
    %v1479 = vsel %vm1124, %v1332, 0.0
    %v1480 = vadd.f32 %v1478, %v1479
    %v1481 = vsel %vm1124, %v1336, 0.0
    %v1482 = vadd.f32 %v1480, %v1481
    %v1483 = vsel %vm1124, %v1340, 0.0
    %v1484 = vadd.f32 %v1482, %v1483
    %v1485 = vsel %vm1124, %v1344, 0.0
    %v1486 = vadd.f32 %v1484, %v1485
    %v1487 = vsel %vm1124, %v1348, 0.0
    %v1488 = vadd.f32 %v1486, %v1487
    %v1489 = vsel %vm1124, %v1352, 0.0
    %v1490 = vadd.f32 %v1488, %v1489
    %v1491 = vsel %vm1124, %v1356, 0.0
    %v1492 = vadd.f32 %v1490, %v1491
    %v1493 = vsel %vm1124, %v1360, 0.0
    %v1494 = vadd.f32 %v1492, %v1493
    %v1495 = vsel %vm1124, %v1364, 0.0
    %v1496 = vadd.f32 %v1494, %v1495
    %v1497 = vsel %vm1124, %v1368, 0.0
    %v1498 = vadd.f32 %v1496, %v1497
    %v1499 = vsel %vm1124, %v1372, 0.0
    %v1500 = vadd.f32 %v1498, %v1499
    %v1501 = vsel %vm1124, %v1376, 0.0
    %v1502 = vadd.f32 %v1500, %v1501
    %v1503 = vsel %vm1124, %v1378, 0.0
    %v1504 = vsel %vm1124, %v1382, 0.0
    %v1505 = vadd.f32 %v1503, %v1504
    %v1506 = vsel %vm1124, %v1386, 0.0
    %v1507 = vadd.f32 %v1505, %v1506
    %v1508 = vsel %vm1124, %v1390, 0.0
    %v1509 = vadd.f32 %v1507, %v1508
    %v1510 = vsel %vm1124, %v1394, 0.0
    %v1511 = vadd.f32 %v1509, %v1510
    %v1512 = vsel %vm1124, %v1398, 0.0
    %v1513 = vadd.f32 %v1511, %v1512
    %v1514 = vsel %vm1124, %v1402, 0.0
    %v1515 = vadd.f32 %v1513, %v1514
    %v1516 = vsel %vm1124, %v1406, 0.0
    %v1517 = vadd.f32 %v1515, %v1516
    %v1518 = vsel %vm1124, %v1410, 0.0
    %v1519 = vadd.f32 %v1517, %v1518
    %v1520 = vsel %vm1124, %v1414, 0.0
    %v1521 = vadd.f32 %v1519, %v1520
    %v1522 = vsel %vm1124, %v1418, 0.0
    %v1523 = vadd.f32 %v1521, %v1522
    %v1524 = vsel %vm1124, %v1422, 0.0
    %v1525 = vadd.f32 %v1523, %v1524
    %v1526 = vsel %vm1124, %v1426, 0.0
    %v1527 = vadd.f32 %v1525, %v1526
    %v1528 = vsel %vm1124, %v1430, 0.0
    %v1529 = vadd.f32 %v1527, %v1528
    %v1530 = vsel %vm1124, %v1434, 0.0
    %v1531 = vadd.f32 %v1529, %v1530
    %v1532 = vsel %vm1124, %v1438, 0.0
    %v1533 = vadd.f32 %v1531, %v1532
    %v1534 = vsel %vm1124, %v1380, 0.0
    %v1535 = vsel %vm1124, %v1384, 0.0
    %v1536 = vadd.f32 %v1534, %v1535
    %v1537 = vsel %vm1124, %v1388, 0.0
    %v1538 = vadd.f32 %v1536, %v1537
    %v1539 = vsel %vm1124, %v1392, 0.0
    %v1540 = vadd.f32 %v1538, %v1539
    %v1541 = vsel %vm1124, %v1396, 0.0
    %v1542 = vadd.f32 %v1540, %v1541
    %v1543 = vsel %vm1124, %v1400, 0.0
    %v1544 = vadd.f32 %v1542, %v1543
    %v1545 = vsel %vm1124, %v1404, 0.0
    %v1546 = vadd.f32 %v1544, %v1545
    %v1547 = vsel %vm1124, %v1408, 0.0
    %v1548 = vadd.f32 %v1546, %v1547
    %v1549 = vsel %vm1124, %v1412, 0.0
    %v1550 = vadd.f32 %v1548, %v1549
    %v1551 = vsel %vm1124, %v1416, 0.0
    %v1552 = vadd.f32 %v1550, %v1551
    %v1553 = vsel %vm1124, %v1420, 0.0
    %v1554 = vadd.f32 %v1552, %v1553
    %v1555 = vsel %vm1124, %v1424, 0.0
    %v1556 = vadd.f32 %v1554, %v1555
    %v1557 = vsel %vm1124, %v1428, 0.0
    %v1558 = vadd.f32 %v1556, %v1557
    %v1559 = vsel %vm1124, %v1432, 0.0
    %v1560 = vadd.f32 %v1558, %v1559
    %v1561 = vsel %vm1124, %v1436, 0.0
    %v1562 = vadd.f32 %v1560, %v1561
    %v1563 = vsel %vm1124, %v1440, 0.0
    %v1564 = vadd.f32 %v1562, %v1563
    %v1565 = vrcp.pop %v1471
    %v1566 = vmul.f32 %v1471, %v1565
    %v1567 = vsub.f32 1.0, %v1566
    %v1568 = vmul.f32 %v1565, %v1567
    %v1569 = vadd.f32 %v1565, %v1568
    %vm1570 = vweird.f32 %v1471
    %vm1571 = vweird.f32 %v1565
    %vm1572 = vmor %vm1570, %vm1571
    %v1573 = vsel %vm1572, %v1565, %v1569
    %v1574 = vand.u32 2147483647, %v1471
    %vm1575 = vcmp.eq.f32.partialorder %v1574, 8.507059e+37
    %v1576 = vand.u32 %v1471, 2147483648
    %v1577 = vor.u32 1.1754944e-38, %v1576
    %v1578 = vsel %vm1575, %v1577, %v1573
    %v1579 = vmul.f32 1.0, %v1578
    %v1580 = vrcp.pop %v1502
    %v1581 = vmul.f32 %v1502, %v1580
    %v1582 = vsub.f32 1.0, %v1581
    %v1583 = vmul.f32 %v1580, %v1582
    %v1584 = vadd.f32 %v1580, %v1583
    %vm1585 = vweird.f32 %v1502
    %vm1586 = vweird.f32 %v1580
    %vm1587 = vmor %vm1585, %vm1586
    %v1588 = vsel %vm1587, %v1580, %v1584
    %v1589 = vand.u32 2147483647, %v1502
    %vm1590 = vcmp.eq.f32.partialorder %v1589, 8.507059e+37
    %v1591 = vand.u32 %v1502, 2147483648
    %v1592 = vor.u32 1.1754944e-38, %v1591
    %v1593 = vsel %vm1590, %v1592, %v1588
    %v1594 = vmul.f32 1.0, %v1593
    %v1595 = vrcp.pop %v1533
    %v1596 = vmul.f32 %v1533, %v1595
    %v1597 = vsub.f32 1.0, %v1596
    %v1598 = vmul.f32 %v1595, %v1597
    %v1599 = vadd.f32 %v1595, %v1598
    %vm1600 = vweird.f32 %v1533
    %vm1601 = vweird.f32 %v1595
    %vm1602 = vmor %vm1600, %vm1601
    %v1603 = vsel %vm1602, %v1595, %v1599
    %v1604 = vand.u32 2147483647, %v1533
    %vm1605 = vcmp.eq.f32.partialorder %v1604, 8.507059e+37
    %v1606 = vand.u32 %v1533, 2147483648
    %v1607 = vor.u32 1.1754944e-38, %v1606
    %v1608 = vsel %vm1605, %v1607, %v1603
    %v1609 = vmul.f32 1.0, %v1608
    %v1610 = vrcp.pop %v1564
    %v1611 = vmul.f32 %v1564, %v1610
    %v1612 = vsub.f32 1.0, %v1611
    %v1613 = vmul.f32 %v1610, %v1612
    %v1614 = vadd.f32 %v1610, %v1613
    %vm1615 = vweird.f32 %v1564
    %vm1616 = vweird.f32 %v1610
    %vm1617 = vmor %vm1615, %vm1616
    %v1618 = vsel %vm1617, %v1610, %v1614
    %v1619 = vand.u32 2147483647, %v1564
    %vm1620 = vcmp.eq.f32.partialorder %v1619, 8.507059e+37
    %v1621 = vand.u32 %v1564, 2147483648
    %v1622 = vor.u32 1.1754944e-38, %v1621
    %v1623 = vsel %vm1620, %v1622, %v1618
    %v1624 = vmul.f32 1.0, %v1623
    %v1625 = vmul.f32 %v1314, %v1579
    %v1626 = vmul.f32 %v1316, %v1594
    %v1627 = vmul.f32 %v1318, %v1579
    %v1628 = vmul.f32 %v1320, %v1594
    %v1629 = vmul.f32 %v1322, %v1579
    %v1630 = vmul.f32 %v1324, %v1594
    %v1631 = vmul.f32 %v1326, %v1579
    %v1632 = vmul.f32 %v1328, %v1594
    %v1633 = vmul.f32 %v1330, %v1579
    %v1634 = vmul.f32 %v1332, %v1594
    %v1635 = vmul.f32 %v1334, %v1579
    %v1636 = vmul.f32 %v1336, %v1594
    %v1637 = vmul.f32 %v1338, %v1579
    %v1638 = vmul.f32 %v1340, %v1594
    %v1639 = vmul.f32 %v1342, %v1579
    %v1640 = vmul.f32 %v1344, %v1594
    %v1641 = vmul.f32 %v1346, %v1579
    %v1642 = vmul.f32 %v1348, %v1594
    %v1643 = vmul.f32 %v1350, %v1579
    %v1644 = vmul.f32 %v1352, %v1594
    %v1645 = vmul.f32 %v1354, %v1579
    %v1646 = vmul.f32 %v1356, %v1594
    %v1647 = vmul.f32 %v1358, %v1579
    %v1648 = vmul.f32 %v1360, %v1594
    %v1649 = vmul.f32 %v1362, %v1579
    %v1650 = vmul.f32 %v1364, %v1594
    %v1651 = vmul.f32 %v1366, %v1579
    %v1652 = vmul.f32 %v1368, %v1594
    %v1653 = vmul.f32 %v1370, %v1579
    %v1654 = vmul.f32 %v1372, %v1594
    %v1655 = vmul.f32 %v1374, %v1579
    %v1656 = vmul.f32 %v1376, %v1594
    %v1657 = vmul.f32 %v1378, %v1609
    %v1658 = vmul.f32 %v1380, %v1624
    %v1659 = vmul.f32 %v1382, %v1609
    %v1660 = vmul.f32 %v1384, %v1624
    %v1661 = vmul.f32 %v1386, %v1609
    %v1662 = vmul.f32 %v1388, %v1624
    %v1663 = vmul.f32 %v1390, %v1609
    %v1664 = vmul.f32 %v1392, %v1624
    %v1665 = vmul.f32 %v1394, %v1609
    %v1666 = vmul.f32 %v1396, %v1624
    %v1667 = vmul.f32 %v1398, %v1609
    %v1668 = vmul.f32 %v1400, %v1624
    %v1669 = vmul.f32 %v1402, %v1609
    %v1670 = vmul.f32 %v1404, %v1624
    %v1671 = vmul.f32 %v1406, %v1609
    %v1672 = vmul.f32 %v1408, %v1624
    %v1673 = vmul.f32 %v1410, %v1609
    %v1674 = vmul.f32 %v1412, %v1624
    %v1675 = vmul.f32 %v1414, %v1609
    %v1676 = vmul.f32 %v1416, %v1624
    %v1677 = vmul.f32 %v1418, %v1609
    %v1678 = vmul.f32 %v1420, %v1624
    %v1679 = vmul.f32 %v1422, %v1609
    %v1680 = vmul.f32 %v1424, %v1624
    %v1681 = vmul.f32 %v1426, %v1609
    %v1682 = vmul.f32 %v1428, %v1624
    %v1683 = vmul.f32 %v1430, %v1609
    %v1684 = vmul.f32 %v1432, %v1624
    %v1685 = vmul.f32 %v1434, %v1609
    %v1686 = vmul.f32 %v1436, %v1624
    %v1687 = vmul.f32 %v1438, %v1609
    %v1688 = vmul.f32 %v1440, %v1624
    %s1689 = vtos %v126
    %v1690 = vstv %s1689
    %v1691 = vmul.f32 %v1690, %v54
    %v1692 = vmul.f32 %v1690, %v55
    %v1693 = vmul.f32 %v1690, %v62
    %v1694 = vmul.f32 %v1690, %v63
    %s1695 = vtos %v129
    %v1696 = vstv %s1695
    %v1697 = vmul.f32 %v1696, %v56
    %v1698 = vmul.f32 %v1696, %v57
    %v1699 = vmul.f32 %v1696, %v64
    %v1700 = vmul.f32 %v1696, %v65
    %v1701 = vadd.f32 %v1691, %v1697
    %v1702 = vadd.f32 %v1692, %v1698
    %v1703 = vadd.f32 %v1693, %v1699
    %v1704 = vadd.f32 %v1694, %v1700
    %s1705 = vtos %v132
    %v1706 = vstv %s1705
    %v1707 = vmul.f32 %v1706, %v58
    %v1708 = vmul.f32 %v1706, %v59
    %v1709 = vmul.f32 %v1706, %v66
    %v1710 = vmul.f32 %v1706, %v67
    %v1711 = vadd.f32 %v1701, %v1707
    %v1712 = vadd.f32 %v1702, %v1708
    %v1713 = vadd.f32 %v1703, %v1709
    %v1714 = vadd.f32 %v1704, %v1710
    %s1715 = vtos %v135
    %v1716 = vstv %s1715
    %v1717 = vmul.f32 %v1716, %v60
    %v1718 = vmul.f32 %v1716, %v61
    %v1719 = vmul.f32 %v1716, %v68
    %v1720 = vmul.f32 %v1716, %v69
    %v1721 = vadd.f32 %v1711, %v1717
    %v1722 = vadd.f32 %v1712, %v1718
    %v1723 = vadd.f32 %v1713, %v1719
    %v1724 = vadd.f32 %v1714, %v1720
    %v1729 = vrot.slane %v1721, 1
    %v1730 = vrot.slane %v1721, 2
    %v1731 = vrot.slane %v1721, 3
    %v1732 = vrot.slane %v1721, 4
    %v1733 = vrot.slane %v1721, 5
    %v1734 = vrot.slane %v1721, 6
    %v1735 = vrot.slane %v1721, 7
    %v1736 = vrot.slane %v1722, 1
    %v1737 = vrot.slane %v1722, 2
    %v1738 = vrot.slane %v1722, 3
    %v1739 = vrot.slane %v1722, 4
    %v1740 = vrot.slane %v1722, 5
    %v1741 = vrot.slane %v1722, 6
    %v1742 = vrot.slane %v1722, 7
    %v1743 = vrot.slane %v1723, 1
    %v1744 = vrot.slane %v1723, 2
    %v1745 = vrot.slane %v1723, 3
    %v1746 = vrot.slane %v1723, 4
    %v1747 = vrot.slane %v1723, 5
    %v1748 = vrot.slane %v1723, 6
    %v1749 = vrot.slane %v1723, 7
    %v1750 = vrot.slane %v1724, 1
    %v1751 = vrot.slane %v1724, 2
    %v1752 = vrot.slane %v1724, 3
    %v1753 = vrot.slane %v1724, 4
    %v1754 = vrot.slane %v1724, 5
    %v1755 = vrot.slane %v1724, 6
    %v1756 = vrot.slane %v1724, 7
    %v1757 = vperm.slane %v1721, 0
    %v1758 = vperm.slane %v1729, 0
    %v1759 = vperm.slane %v1730, 0
    %v1760 = vperm.slane %v1731, 0
    %v1761 = vperm.slane %v1732, 0
    %v1762 = vperm.slane %v1733, 0
    %v1763 = vperm.slane %v1734, 0
    %v1764 = vperm.slane %v1735, 0
    %v1765 = vperm.slane %v1722, 0
    %v1766 = vperm.slane %v1736, 0
    %v1767 = vperm.slane %v1737, 0
    %v1768 = vperm.slane %v1738, 0
    %v1769 = vperm.slane %v1739, 0
    %v1770 = vperm.slane %v1740, 0
    %v1771 = vperm.slane %v1741, 0
    %v1772 = vperm.slane %v1742, 0
    %v1773 = vperm.slane %v1723, 0
    %v1774 = vperm.slane %v1743, 0
    %v1775 = vperm.slane %v1744, 0
    %v1776 = vperm.slane %v1745, 0
    %v1777 = vperm.slane %v1746, 0
    %v1778 = vperm.slane %v1747, 0
    %v1779 = vperm.slane %v1748, 0
    %v1780 = vperm.slane %v1749, 0
    %v1781 = vperm.slane %v1724, 0
    %v1782 = vperm.slane %v1750, 0
    %v1783 = vperm.slane %v1751, 0
    %v1784 = vperm.slane %v1752, 0
    %v1785 = vperm.slane %v1753, 0
    %v1786 = vperm.slane %v1754, 0
    %v1787 = vperm.slane %v1755, 0
    %v1788 = vperm.slane %v1756, 0
    %v1821 = vmul.f32 %v1625, %v1757
    %v1822 = vmul.f32 %v1626, %v1757
    %v1823 = vmul.f32 %v1627, %v1758
    %v1824 = vmul.f32 %v1628, %v1758
    %v1825 = vmul.f32 %v1629, %v1759
    %v1826 = vmul.f32 %v1630, %v1759
    %v1827 = vmul.f32 %v1631, %v1760
    %v1828 = vmul.f32 %v1632, %v1760
    %v1829 = vmul.f32 %v1633, %v1761
    %v1830 = vmul.f32 %v1634, %v1761
    %v1831 = vmul.f32 %v1635, %v1762
    %v1832 = vmul.f32 %v1636, %v1762
    %v1833 = vmul.f32 %v1637, %v1763
    %v1834 = vmul.f32 %v1638, %v1763
    %v1835 = vmul.f32 %v1639, %v1764
    %v1836 = vmul.f32 %v1640, %v1764
    %v1837 = vmul.f32 %v1641, %v1765
    %v1838 = vmul.f32 %v1642, %v1765
    %v1839 = vmul.f32 %v1643, %v1766
    %v1840 = vmul.f32 %v1644, %v1766
    %v1841 = vmul.f32 %v1645, %v1767
    %v1842 = vmul.f32 %v1646, %v1767
    %v1843 = vmul.f32 %v1647, %v1768
    %v1844 = vmul.f32 %v1648, %v1768
    %v1845 = vmul.f32 %v1649, %v1769
    %v1846 = vmul.f32 %v1650, %v1769
    %v1847 = vmul.f32 %v1651, %v1770
    %v1848 = vmul.f32 %v1652, %v1770
    %v1849 = vmul.f32 %v1653, %v1771
    %v1850 = vmul.f32 %v1654, %v1771
    %v1851 = vmul.f32 %v1655, %v1772
    %v1852 = vmul.f32 %v1656, %v1772
    %v1853 = vmul.f32 %v1657, %v1773
    %v1854 = vmul.f32 %v1658, %v1773
    %v1855 = vmul.f32 %v1659, %v1774
    %v1856 = vmul.f32 %v1660, %v1774
    %v1857 = vmul.f32 %v1661, %v1775
    %v1858 = vmul.f32 %v1662, %v1775
    %v1859 = vmul.f32 %v1663, %v1776
    %v1860 = vmul.f32 %v1664, %v1776
    %v1861 = vmul.f32 %v1665, %v1777
    %v1862 = vmul.f32 %v1666, %v1777
    %v1863 = vmul.f32 %v1667, %v1778
    %v1864 = vmul.f32 %v1668, %v1778
    %v1865 = vmul.f32 %v1669, %v1779
    %v1866 = vmul.f32 %v1670, %v1779
    %v1867 = vmul.f32 %v1671, %v1780
    %v1868 = vmul.f32 %v1672, %v1780
    %v1869 = vmul.f32 %v1673, %v1781
    %v1870 = vmul.f32 %v1674, %v1781
    %v1871 = vmul.f32 %v1675, %v1782
    %v1872 = vmul.f32 %v1676, %v1782
    %v1873 = vmul.f32 %v1677, %v1783
    %v1874 = vmul.f32 %v1678, %v1783
    %v1875 = vmul.f32 %v1679, %v1784
    %v1876 = vmul.f32 %v1680, %v1784
    %v1877 = vmul.f32 %v1681, %v1785
    %v1878 = vmul.f32 %v1682, %v1785
    %v1879 = vmul.f32 %v1683, %v1786
    %v1880 = vmul.f32 %v1684, %v1786
    %v1881 = vmul.f32 %v1685, %v1787
    %v1882 = vmul.f32 %v1686, %v1787
    %v1883 = vmul.f32 %v1687, %v1788
    %v1884 = vmul.f32 %v1688, %v1788
    %v1885 = vsel %vm1124, %v1821, 0.0
    %v1886 = vsel %vm1124, %v1823, 0.0
    %v1887 = vadd.f32 %v1885, %v1886
    %v1888 = vsel %vm1124, %v1825, 0.0
    %v1889 = vadd.f32 %v1887, %v1888
    %v1890 = vsel %vm1124, %v1827, 0.0
    %v1891 = vadd.f32 %v1889, %v1890
    %v1892 = vsel %vm1124, %v1829, 0.0
    %v1893 = vadd.f32 %v1891, %v1892
    %v1894 = vsel %vm1124, %v1831, 0.0
    %v1895 = vadd.f32 %v1893, %v1894
    %v1896 = vsel %vm1124, %v1833, 0.0
    %v1897 = vadd.f32 %v1895, %v1896
    %v1898 = vsel %vm1124, %v1835, 0.0
    %v1899 = vadd.f32 %v1897, %v1898
    %v1900 = vsel %vm1124, %v1837, 0.0
    %v1901 = vadd.f32 %v1899, %v1900
    %v1902 = vsel %vm1124, %v1839, 0.0
    %v1903 = vadd.f32 %v1901, %v1902
    %v1904 = vsel %vm1124, %v1841, 0.0
    %v1905 = vadd.f32 %v1903, %v1904
    %v1906 = vsel %vm1124, %v1843, 0.0
    %v1907 = vadd.f32 %v1905, %v1906
    %v1908 = vsel %vm1124, %v1845, 0.0
    %v1909 = vadd.f32 %v1907, %v1908
    %v1910 = vsel %vm1124, %v1847, 0.0
    %v1911 = vadd.f32 %v1909, %v1910
    %v1912 = vsel %vm1124, %v1849, 0.0
    %v1913 = vadd.f32 %v1911, %v1912
    %v1914 = vsel %vm1124, %v1851, 0.0
    %v1915 = vadd.f32 %v1913, %v1914
    %v1916 = vsel %vm1124, %v1822, 0.0
    %v1917 = vsel %vm1124, %v1824, 0.0
    %v1918 = vadd.f32 %v1916, %v1917
    %v1919 = vsel %vm1124, %v1826, 0.0
    %v1920 = vadd.f32 %v1918, %v1919
    %v1921 = vsel %vm1124, %v1828, 0.0
    %v1922 = vadd.f32 %v1920, %v1921
    %v1923 = vsel %vm1124, %v1830, 0.0
    %v1924 = vadd.f32 %v1922, %v1923
    %v1925 = vsel %vm1124, %v1832, 0.0
    %v1926 = vadd.f32 %v1924, %v1925
    %v1927 = vsel %vm1124, %v1834, 0.0
    %v1928 = vadd.f32 %v1926, %v1927
    %v1929 = vsel %vm1124, %v1836, 0.0
    %v1930 = vadd.f32 %v1928, %v1929
    %v1931 = vsel %vm1124, %v1838, 0.0
    %v1932 = vadd.f32 %v1930, %v1931
    %v1933 = vsel %vm1124, %v1840, 0.0
    %v1934 = vadd.f32 %v1932, %v1933
    %v1935 = vsel %vm1124, %v1842, 0.0
    %v1936 = vadd.f32 %v1934, %v1935
    %v1937 = vsel %vm1124, %v1844, 0.0
    %v1938 = vadd.f32 %v1936, %v1937
    %v1939 = vsel %vm1124, %v1846, 0.0
    %v1940 = vadd.f32 %v1938, %v1939
    %v1941 = vsel %vm1124, %v1848, 0.0
    %v1942 = vadd.f32 %v1940, %v1941
    %v1943 = vsel %vm1124, %v1850, 0.0
    %v1944 = vadd.f32 %v1942, %v1943
    %v1945 = vsel %vm1124, %v1852, 0.0
    %v1946 = vadd.f32 %v1944, %v1945
    %v1947 = vsel %vm1124, %v1853, 0.0
    %v1948 = vsel %vm1124, %v1855, 0.0
    %v1949 = vadd.f32 %v1947, %v1948
    %v1950 = vsel %vm1124, %v1857, 0.0
    %v1951 = vadd.f32 %v1949, %v1950
    %v1952 = vsel %vm1124, %v1859, 0.0
    %v1953 = vadd.f32 %v1951, %v1952
    %v1954 = vsel %vm1124, %v1861, 0.0
    %v1955 = vadd.f32 %v1953, %v1954
    %v1956 = vsel %vm1124, %v1863, 0.0
    %v1957 = vadd.f32 %v1955, %v1956
    %v1958 = vsel %vm1124, %v1865, 0.0
    %v1959 = vadd.f32 %v1957, %v1958
    %v1960 = vsel %vm1124, %v1867, 0.0
    %v1961 = vadd.f32 %v1959, %v1960
    %v1962 = vsel %vm1124, %v1869, 0.0
    %v1963 = vadd.f32 %v1961, %v1962
    %v1964 = vsel %vm1124, %v1871, 0.0
    %v1965 = vadd.f32 %v1963, %v1964
    %v1966 = vsel %vm1124, %v1873, 0.0
    %v1967 = vadd.f32 %v1965, %v1966
    %v1968 = vsel %vm1124, %v1875, 0.0
    %v1969 = vadd.f32 %v1967, %v1968
    %v1970 = vsel %vm1124, %v1877, 0.0
    %v1971 = vadd.f32 %v1969, %v1970
    %v1972 = vsel %vm1124, %v1879, 0.0
    %v1973 = vadd.f32 %v1971, %v1972
    %v1974 = vsel %vm1124, %v1881, 0.0
    %v1975 = vadd.f32 %v1973, %v1974
    %v1976 = vsel %vm1124, %v1883, 0.0
    %v1977 = vadd.f32 %v1975, %v1976
    %v1978 = vsel %vm1124, %v1854, 0.0
    %v1979 = vsel %vm1124, %v1856, 0.0
    %v1980 = vadd.f32 %v1978, %v1979
    %v1981 = vsel %vm1124, %v1858, 0.0
    %v1982 = vadd.f32 %v1980, %v1981
    %v1983 = vsel %vm1124, %v1860, 0.0
    %v1984 = vadd.f32 %v1982, %v1983
    %v1985 = vsel %vm1124, %v1862, 0.0
    %v1986 = vadd.f32 %v1984, %v1985
    %v1987 = vsel %vm1124, %v1864, 0.0
    %v1988 = vadd.f32 %v1986, %v1987
    %v1989 = vsel %vm1124, %v1866, 0.0
    %v1990 = vadd.f32 %v1988, %v1989
    %v1991 = vsel %vm1124, %v1868, 0.0
    %v1992 = vadd.f32 %v1990, %v1991
    %v1993 = vsel %vm1124, %v1870, 0.0
    %v1994 = vadd.f32 %v1992, %v1993
    %v1995 = vsel %vm1124, %v1872, 0.0
    %v1996 = vadd.f32 %v1994, %v1995
    %v1997 = vsel %vm1124, %v1874, 0.0
    %v1998 = vadd.f32 %v1996, %v1997
    %v1999 = vsel %vm1124, %v1876, 0.0
    %v2000 = vadd.f32 %v1998, %v1999
    %v2001 = vsel %vm1124, %v1878, 0.0
    %v2002 = vadd.f32 %v2000, %v2001
    %v2003 = vsel %vm1124, %v1880, 0.0
    %v2004 = vadd.f32 %v2002, %v2003
    %v2005 = vsel %vm1124, %v1882, 0.0
    %v2006 = vadd.f32 %v2004, %v2005
    %v2007 = vsel %vm1124, %v1884, 0.0
    %v2008 = vadd.f32 %v2006, %v2007
    %v2009 = vrot.slane %v126, 1
    %s2010 = vtos %v2009
    %v2011 = vstv %s2010
    %v2012 = vmul.f32 %v2011, %v54
    %v2013 = vmul.f32 %v2011, %v55
    %v2014 = vmul.f32 %v2011, %v62
    %v2015 = vmul.f32 %v2011, %v63
    %v2016 = vrot.slane %v129, 1
    %s2017 = vtos %v2016
    %v2018 = vstv %s2017
    %v2019 = vmul.f32 %v2018, %v56
    %v2020 = vmul.f32 %v2018, %v57
    %v2021 = vmul.f32 %v2018, %v64
    %v2022 = vmul.f32 %v2018, %v65
    %v2023 = vadd.f32 %v2012, %v2019
    %v2024 = vadd.f32 %v2013, %v2020
    %v2025 = vadd.f32 %v2014, %v2021
    %v2026 = vadd.f32 %v2015, %v2022
    %v2027 = vrot.slane %v132, 1
    %s2028 = vtos %v2027
    %v2029 = vstv %s2028
    %v2030 = vmul.f32 %v2029, %v58
    %v2031 = vmul.f32 %v2029, %v59
    %v2032 = vmul.f32 %v2029, %v66
    %v2033 = vmul.f32 %v2029, %v67
    %v2034 = vadd.f32 %v2023, %v2030
    %v2035 = vadd.f32 %v2024, %v2031
    %v2036 = vadd.f32 %v2025, %v2032
    %v2037 = vadd.f32 %v2026, %v2033
    %v2038 = vrot.slane %v135, 1
    %s2039 = vtos %v2038
    %v2040 = vstv %s2039
    %v2041 = vmul.f32 %v2040, %v60
    %v2042 = vmul.f32 %v2040, %v61
    %v2043 = vmul.f32 %v2040, %v68
    %v2044 = vmul.f32 %v2040, %v69
    %v2045 = vadd.f32 %v2034, %v2041
    %v2046 = vadd.f32 %v2035, %v2042
    %v2047 = vadd.f32 %v2036, %v2043
    %v2048 = vadd.f32 %v2037, %v2044
    %v2053 = vrot.slane %v2045, 1
    %v2054 = vrot.slane %v2045, 2
    %v2055 = vrot.slane %v2045, 3
    %v2056 = vrot.slane %v2045, 4
    %v2057 = vrot.slane %v2045, 5
    %v2058 = vrot.slane %v2045, 6
    %v2059 = vrot.slane %v2045, 7
    %v2060 = vrot.slane %v2046, 1
    %v2061 = vrot.slane %v2046, 2
    %v2062 = vrot.slane %v2046, 3
    %v2063 = vrot.slane %v2046, 4
    %v2064 = vrot.slane %v2046, 5
    %v2065 = vrot.slane %v2046, 6
    %v2066 = vrot.slane %v2046, 7
    %v2067 = vrot.slane %v2047, 1
    %v2068 = vrot.slane %v2047, 2
    %v2069 = vrot.slane %v2047, 3
    %v2070 = vrot.slane %v2047, 4
    %v2071 = vrot.slane %v2047, 5
    %v2072 = vrot.slane %v2047, 6
    %v2073 = vrot.slane %v2047, 7
    %v2074 = vrot.slane %v2048, 1
    %v2075 = vrot.slane %v2048, 2
    %v2076 = vrot.slane %v2048, 3
    %v2077 = vrot.slane %v2048, 4
    %v2078 = vrot.slane %v2048, 5
    %v2079 = vrot.slane %v2048, 6
    %v2080 = vrot.slane %v2048, 7
    %v2081 = vperm.slane %v2045, 0
    %v2082 = vperm.slane %v2053, 0
    %v2083 = vperm.slane %v2054, 0
    %v2084 = vperm.slane %v2055, 0
    %v2085 = vperm.slane %v2056, 0
    %v2086 = vperm.slane %v2057, 0
    %v2087 = vperm.slane %v2058, 0
    %v2088 = vperm.slane %v2059, 0
    %v2089 = vperm.slane %v2046, 0
    %v2090 = vperm.slane %v2060, 0
    %v2091 = vperm.slane %v2061, 0
    %v2092 = vperm.slane %v2062, 0
    %v2093 = vperm.slane %v2063, 0
    %v2094 = vperm.slane %v2064, 0
    %v2095 = vperm.slane %v2065, 0
    %v2096 = vperm.slane %v2066, 0
    %v2097 = vperm.slane %v2047, 0
    %v2098 = vperm.slane %v2067, 0
    %v2099 = vperm.slane %v2068, 0
    %v2100 = vperm.slane %v2069, 0
    %v2101 = vperm.slane %v2070, 0
    %v2102 = vperm.slane %v2071, 0
    %v2103 = vperm.slane %v2072, 0
    %v2104 = vperm.slane %v2073, 0
    %v2105 = vperm.slane %v2048, 0
    %v2106 = vperm.slane %v2074, 0
    %v2107 = vperm.slane %v2075, 0
    %v2108 = vperm.slane %v2076, 0
    %v2109 = vperm.slane %v2077, 0
    %v2110 = vperm.slane %v2078, 0
    %v2111 = vperm.slane %v2079, 0
    %v2112 = vperm.slane %v2080, 0
    %v2145 = vmul.f32 %v1625, %v2081
    %v2146 = vmul.f32 %v1626, %v2081
    %v2147 = vmul.f32 %v1627, %v2082
    %v2148 = vmul.f32 %v1628, %v2082
    %v2149 = vmul.f32 %v1629, %v2083
    %v2150 = vmul.f32 %v1630, %v2083
    %v2151 = vmul.f32 %v1631, %v2084
    %v2152 = vmul.f32 %v1632, %v2084
    %v2153 = vmul.f32 %v1633, %v2085
    %v2154 = vmul.f32 %v1634, %v2085
    %v2155 = vmul.f32 %v1635, %v2086
    %v2156 = vmul.f32 %v1636, %v2086
    %v2157 = vmul.f32 %v1637, %v2087
    %v2158 = vmul.f32 %v1638, %v2087
    %v2159 = vmul.f32 %v1639, %v2088
    %v2160 = vmul.f32 %v1640, %v2088
    %v2161 = vmul.f32 %v1641, %v2089
    %v2162 = vmul.f32 %v1642, %v2089
    %v2163 = vmul.f32 %v1643, %v2090
    %v2164 = vmul.f32 %v1644, %v2090
    %v2165 = vmul.f32 %v1645, %v2091
    %v2166 = vmul.f32 %v1646, %v2091
    %v2167 = vmul.f32 %v1647, %v2092
    %v2168 = vmul.f32 %v1648, %v2092
    %v2169 = vmul.f32 %v1649, %v2093
    %v2170 = vmul.f32 %v1650, %v2093
    %v2171 = vmul.f32 %v1651, %v2094
    %v2172 = vmul.f32 %v1652, %v2094
    %v2173 = vmul.f32 %v1653, %v2095
    %v2174 = vmul.f32 %v1654, %v2095
    %v2175 = vmul.f32 %v1655, %v2096
    %v2176 = vmul.f32 %v1656, %v2096
    %v2177 = vmul.f32 %v1657, %v2097
    %v2178 = vmul.f32 %v1658, %v2097
    %v2179 = vmul.f32 %v1659, %v2098
    %v2180 = vmul.f32 %v1660, %v2098
    %v2181 = vmul.f32 %v1661, %v2099
    %v2182 = vmul.f32 %v1662, %v2099
    %v2183 = vmul.f32 %v1663, %v2100
    %v2184 = vmul.f32 %v1664, %v2100
    %v2185 = vmul.f32 %v1665, %v2101
    %v2186 = vmul.f32 %v1666, %v2101
    %v2187 = vmul.f32 %v1667, %v2102
    %v2188 = vmul.f32 %v1668, %v2102
    %v2189 = vmul.f32 %v1669, %v2103
    %v2190 = vmul.f32 %v1670, %v2103
    %v2191 = vmul.f32 %v1671, %v2104
    %v2192 = vmul.f32 %v1672, %v2104
    %v2193 = vmul.f32 %v1673, %v2105
    %v2194 = vmul.f32 %v1674, %v2105
    %v2195 = vmul.f32 %v1675, %v2106
    %v2196 = vmul.f32 %v1676, %v2106
    %v2197 = vmul.f32 %v1677, %v2107
    %v2198 = vmul.f32 %v1678, %v2107
    %v2199 = vmul.f32 %v1679, %v2108
    %v2200 = vmul.f32 %v1680, %v2108
    %v2201 = vmul.f32 %v1681, %v2109
    %v2202 = vmul.f32 %v1682, %v2109
    %v2203 = vmul.f32 %v1683, %v2110
    %v2204 = vmul.f32 %v1684, %v2110
    %v2205 = vmul.f32 %v1685, %v2111
    %v2206 = vmul.f32 %v1686, %v2111
    %v2207 = vmul.f32 %v1687, %v2112
    %v2208 = vmul.f32 %v1688, %v2112
    %v2209 = vsel %vm1124, %v2145, 0.0
    %v2210 = vsel %vm1124, %v2147, 0.0
    %v2211 = vadd.f32 %v2209, %v2210
    %v2212 = vsel %vm1124, %v2149, 0.0
    %v2213 = vadd.f32 %v2211, %v2212
    %v2214 = vsel %vm1124, %v2151, 0.0
    %v2215 = vadd.f32 %v2213, %v2214
    %v2216 = vsel %vm1124, %v2153, 0.0
    %v2217 = vadd.f32 %v2215, %v2216
    %v2218 = vsel %vm1124, %v2155, 0.0
    %v2219 = vadd.f32 %v2217, %v2218
    %v2220 = vsel %vm1124, %v2157, 0.0
    %v2221 = vadd.f32 %v2219, %v2220
    %v2222 = vsel %vm1124, %v2159, 0.0
    %v2223 = vadd.f32 %v2221, %v2222
    %v2224 = vsel %vm1124, %v2161, 0.0
    %v2225 = vadd.f32 %v2223, %v2224
    %v2226 = vsel %vm1124, %v2163, 0.0
    %v2227 = vadd.f32 %v2225, %v2226
    %v2228 = vsel %vm1124, %v2165, 0.0
    %v2229 = vadd.f32 %v2227, %v2228
    %v2230 = vsel %vm1124, %v2167, 0.0
    %v2231 = vadd.f32 %v2229, %v2230
    %v2232 = vsel %vm1124, %v2169, 0.0
    %v2233 = vadd.f32 %v2231, %v2232
    %v2234 = vsel %vm1124, %v2171, 0.0
    %v2235 = vadd.f32 %v2233, %v2234
    %v2236 = vsel %vm1124, %v2173, 0.0
    %v2237 = vadd.f32 %v2235, %v2236
    %v2238 = vsel %vm1124, %v2175, 0.0
    %v2239 = vadd.f32 %v2237, %v2238
    %v2240 = vsel %vm1124, %v2146, 0.0
    %v2241 = vsel %vm1124, %v2148, 0.0
    %v2242 = vadd.f32 %v2240, %v2241
    %v2243 = vsel %vm1124, %v2150, 0.0
    %v2244 = vadd.f32 %v2242, %v2243
    %v2245 = vsel %vm1124, %v2152, 0.0
    %v2246 = vadd.f32 %v2244, %v2245
    %v2247 = vsel %vm1124, %v2154, 0.0
    %v2248 = vadd.f32 %v2246, %v2247
    %v2249 = vsel %vm1124, %v2156, 0.0
    %v2250 = vadd.f32 %v2248, %v2249
    %v2251 = vsel %vm1124, %v2158, 0.0
    %v2252 = vadd.f32 %v2250, %v2251
    %v2253 = vsel %vm1124, %v2160, 0.0
    %v2254 = vadd.f32 %v2252, %v2253
    %v2255 = vsel %vm1124, %v2162, 0.0
    %v2256 = vadd.f32 %v2254, %v2255
    %v2257 = vsel %vm1124, %v2164, 0.0
    %v2258 = vadd.f32 %v2256, %v2257
    %v2259 = vsel %vm1124, %v2166, 0.0
    %v2260 = vadd.f32 %v2258, %v2259
    %v2261 = vsel %vm1124, %v2168, 0.0
    %v2262 = vadd.f32 %v2260, %v2261
    %v2263 = vsel %vm1124, %v2170, 0.0
    %v2264 = vadd.f32 %v2262, %v2263
    %v2265 = vsel %vm1124, %v2172, 0.0
    %v2266 = vadd.f32 %v2264, %v2265
    %v2267 = vsel %vm1124, %v2174, 0.0
    %v2268 = vadd.f32 %v2266, %v2267
    %v2269 = vsel %vm1124, %v2176, 0.0
    %v2270 = vadd.f32 %v2268, %v2269
    %v2271 = vsel %vm1124, %v2177, 0.0
    %v2272 = vsel %vm1124, %v2179, 0.0
    %v2273 = vadd.f32 %v2271, %v2272
    %v2274 = vsel %vm1124, %v2181, 0.0
    %v2275 = vadd.f32 %v2273, %v2274
    %v2276 = vsel %vm1124, %v2183, 0.0
    %v2277 = vadd.f32 %v2275, %v2276
    %v2278 = vsel %vm1124, %v2185, 0.0
    %v2279 = vadd.f32 %v2277, %v2278
    %v2280 = vsel %vm1124, %v2187, 0.0
    %v2281 = vadd.f32 %v2279, %v2280
    %v2282 = vsel %vm1124, %v2189, 0.0
    %v2283 = vadd.f32 %v2281, %v2282
    %v2284 = vsel %vm1124, %v2191, 0.0
    %v2285 = vadd.f32 %v2283, %v2284
    %v2286 = vsel %vm1124, %v2193, 0.0
    %v2287 = vadd.f32 %v2285, %v2286
    %v2288 = vsel %vm1124, %v2195, 0.0
    %v2289 = vadd.f32 %v2287, %v2288
    %v2290 = vsel %vm1124, %v2197, 0.0
    %v2291 = vadd.f32 %v2289, %v2290
    %v2292 = vsel %vm1124, %v2199, 0.0
    %v2293 = vadd.f32 %v2291, %v2292
    %v2294 = vsel %vm1124, %v2201, 0.0
    %v2295 = vadd.f32 %v2293, %v2294
    %v2296 = vsel %vm1124, %v2203, 0.0
    %v2297 = vadd.f32 %v2295, %v2296
    %v2298 = vsel %vm1124, %v2205, 0.0
    %v2299 = vadd.f32 %v2297, %v2298
    %v2300 = vsel %vm1124, %v2207, 0.0
    %v2301 = vadd.f32 %v2299, %v2300
    %v2302 = vsel %vm1124, %v2178, 0.0
    %v2303 = vsel %vm1124, %v2180, 0.0
    %v2304 = vadd.f32 %v2302, %v2303
    %v2305 = vsel %vm1124, %v2182, 0.0
    %v2306 = vadd.f32 %v2304, %v2305
    %v2307 = vsel %vm1124, %v2184, 0.0
    %v2308 = vadd.f32 %v2306, %v2307
    %v2309 = vsel %vm1124, %v2186, 0.0
    %v2310 = vadd.f32 %v2308, %v2309
    %v2311 = vsel %vm1124, %v2188, 0.0
    %v2312 = vadd.f32 %v2310, %v2311
    %v2313 = vsel %vm1124, %v2190, 0.0
    %v2314 = vadd.f32 %v2312, %v2313
    %v2315 = vsel %vm1124, %v2192, 0.0
    %v2316 = vadd.f32 %v2314, %v2315
    %v2317 = vsel %vm1124, %v2194, 0.0
    %v2318 = vadd.f32 %v2316, %v2317
    %v2319 = vsel %vm1124, %v2196, 0.0
    %v2320 = vadd.f32 %v2318, %v2319
    %v2321 = vsel %vm1124, %v2198, 0.0
    %v2322 = vadd.f32 %v2320, %v2321
    %v2323 = vsel %vm1124, %v2200, 0.0
    %v2324 = vadd.f32 %v2322, %v2323
    %v2325 = vsel %vm1124, %v2202, 0.0
    %v2326 = vadd.f32 %v2324, %v2325
    %v2327 = vsel %vm1124, %v2204, 0.0
    %v2328 = vadd.f32 %v2326, %v2327
    %v2329 = vsel %vm1124, %v2206, 0.0
    %v2330 = vadd.f32 %v2328, %v2329
    %v2331 = vsel %vm1124, %v2208, 0.0
    %v2332 = vadd.f32 %v2330, %v2331
    %v2333 = vrot.slane %v126, 2
    %s2334 = vtos %v2333
    %v2335 = vstv %s2334
    %v2336 = vmul.f32 %v2335, %v54
    %v2337 = vmul.f32 %v2335, %v55
    %v2338 = vmul.f32 %v2335, %v62
    %v2339 = vmul.f32 %v2335, %v63
    %v2340 = vrot.slane %v129, 2
    %s2341 = vtos %v2340
    %v2342 = vstv %s2341
    %v2343 = vmul.f32 %v2342, %v56
    %v2344 = vmul.f32 %v2342, %v57
    %v2345 = vmul.f32 %v2342, %v64
    %v2346 = vmul.f32 %v2342, %v65
    %v2347 = vadd.f32 %v2336, %v2343
    %v2348 = vadd.f32 %v2337, %v2344
    %v2349 = vadd.f32 %v2338, %v2345
    %v2350 = vadd.f32 %v2339, %v2346
    %v2351 = vrot.slane %v132, 2
    %s2352 = vtos %v2351
    %v2353 = vstv %s2352
    %v2354 = vmul.f32 %v2353, %v58
    %v2355 = vmul.f32 %v2353, %v59
    %v2356 = vmul.f32 %v2353, %v66
    %v2357 = vmul.f32 %v2353, %v67
    %v2358 = vadd.f32 %v2347, %v2354
    %v2359 = vadd.f32 %v2348, %v2355
    %v2360 = vadd.f32 %v2349, %v2356
    %v2361 = vadd.f32 %v2350, %v2357
    %v2362 = vrot.slane %v135, 2
    %s2363 = vtos %v2362
    %v2364 = vstv %s2363
    %v2365 = vmul.f32 %v2364, %v60
    %v2366 = vmul.f32 %v2364, %v61
    %v2367 = vmul.f32 %v2364, %v68
    %v2368 = vmul.f32 %v2364, %v69
    %v2369 = vadd.f32 %v2358, %v2365
    %v2370 = vadd.f32 %v2359, %v2366
    %v2371 = vadd.f32 %v2360, %v2367
    %v2372 = vadd.f32 %v2361, %v2368
    %v2377 = vrot.slane %v2369, 1
    %v2378 = vrot.slane %v2369, 2
    %v2379 = vrot.slane %v2369, 3
    %v2380 = vrot.slane %v2369, 4
    %v2381 = vrot.slane %v2369, 5
    %v2382 = vrot.slane %v2369, 6
    %v2383 = vrot.slane %v2369, 7
    %v2384 = vrot.slane %v2370, 1
    %v2385 = vrot.slane %v2370, 2
    %v2386 = vrot.slane %v2370, 3
    %v2387 = vrot.slane %v2370, 4
    %v2388 = vrot.slane %v2370, 5
    %v2389 = vrot.slane %v2370, 6
    %v2390 = vrot.slane %v2370, 7
    %v2391 = vrot.slane %v2371, 1
    %v2392 = vrot.slane %v2371, 2
    %v2393 = vrot.slane %v2371, 3
    %v2394 = vrot.slane %v2371, 4
    %v2395 = vrot.slane %v2371, 5
    %v2396 = vrot.slane %v2371, 6
    %v2397 = vrot.slane %v2371, 7
    %v2398 = vrot.slane %v2372, 1
    %v2399 = vrot.slane %v2372, 2
    %v2400 = vrot.slane %v2372, 3
    %v2401 = vrot.slane %v2372, 4
    %v2402 = vrot.slane %v2372, 5
    %v2403 = vrot.slane %v2372, 6
    %v2404 = vrot.slane %v2372, 7
    %v2405 = vperm.slane %v2369, 0
    %v2406 = vperm.slane %v2377, 0
    %v2407 = vperm.slane %v2378, 0
    %v2408 = vperm.slane %v2379, 0
    %v2409 = vperm.slane %v2380, 0
    %v2410 = vperm.slane %v2381, 0
    %v2411 = vperm.slane %v2382, 0
    %v2412 = vperm.slane %v2383, 0
    %v2413 = vperm.slane %v2370, 0
    %v2414 = vperm.slane %v2384, 0
    %v2415 = vperm.slane %v2385, 0
    %v2416 = vperm.slane %v2386, 0
    %v2417 = vperm.slane %v2387, 0
    %v2418 = vperm.slane %v2388, 0
    %v2419 = vperm.slane %v2389, 0
    %v2420 = vperm.slane %v2390, 0
    %v2421 = vperm.slane %v2371, 0
    %v2422 = vperm.slane %v2391, 0
    %v2423 = vperm.slane %v2392, 0
    %v2424 = vperm.slane %v2393, 0
    %v2425 = vperm.slane %v2394, 0
    %v2426 = vperm.slane %v2395, 0
    %v2427 = vperm.slane %v2396, 0
    %v2428 = vperm.slane %v2397, 0
    %v2429 = vperm.slane %v2372, 0
    %v2430 = vperm.slane %v2398, 0
    %v2431 = vperm.slane %v2399, 0
    %v2432 = vperm.slane %v2400, 0
    %v2433 = vperm.slane %v2401, 0
    %v2434 = vperm.slane %v2402, 0
    %v2435 = vperm.slane %v2403, 0
    %v2436 = vperm.slane %v2404, 0
    %v2469 = vmul.f32 %v1625, %v2405
    %v2470 = vmul.f32 %v1626, %v2405
    %v2471 = vmul.f32 %v1627, %v2406
    %v2472 = vmul.f32 %v1628, %v2406
    %v2473 = vmul.f32 %v1629, %v2407
    %v2474 = vmul.f32 %v1630, %v2407
    %v2475 = vmul.f32 %v1631, %v2408
    %v2476 = vmul.f32 %v1632, %v2408
    %v2477 = vmul.f32 %v1633, %v2409
    %v2478 = vmul.f32 %v1634, %v2409
    %v2479 = vmul.f32 %v1635, %v2410
    %v2480 = vmul.f32 %v1636, %v2410
    %v2481 = vmul.f32 %v1637, %v2411
    %v2482 = vmul.f32 %v1638, %v2411
    %v2483 = vmul.f32 %v1639, %v2412
    %v2484 = vmul.f32 %v1640, %v2412
    %v2485 = vmul.f32 %v1641, %v2413
    %v2486 = vmul.f32 %v1642, %v2413
    %v2487 = vmul.f32 %v1643, %v2414
    %v2488 = vmul.f32 %v1644, %v2414
    %v2489 = vmul.f32 %v1645, %v2415
    %v2490 = vmul.f32 %v1646, %v2415
    %v2491 = vmul.f32 %v1647, %v2416
    %v2492 = vmul.f32 %v1648, %v2416
    %v2493 = vmul.f32 %v1649, %v2417
    %v2494 = vmul.f32 %v1650, %v2417
    %v2495 = vmul.f32 %v1651, %v2418
    %v2496 = vmul.f32 %v1652, %v2418
    %v2497 = vmul.f32 %v1653, %v2419
    %v2498 = vmul.f32 %v1654, %v2419
    %v2499 = vmul.f32 %v1655, %v2420
    %v2500 = vmul.f32 %v1656, %v2420
    %v2501 = vmul.f32 %v1657, %v2421
    %v2502 = vmul.f32 %v1658, %v2421
    %v2503 = vmul.f32 %v1659, %v2422
    %v2504 = vmul.f32 %v1660, %v2422
    %v2505 = vmul.f32 %v1661, %v2423
    %v2506 = vmul.f32 %v1662, %v2423
    %v2507 = vmul.f32 %v1663, %v2424
    %v2508 = vmul.f32 %v1664, %v2424
    %v2509 = vmul.f32 %v1665, %v2425
    %v2510 = vmul.f32 %v1666, %v2425
    %v2511 = vmul.f32 %v1667, %v2426
    %v2512 = vmul.f32 %v1668, %v2426
    %v2513 = vmul.f32 %v1669, %v2427
    %v2514 = vmul.f32 %v1670, %v2427
    %v2515 = vmul.f32 %v1671, %v2428
    %v2516 = vmul.f32 %v1672, %v2428
    %v2517 = vmul.f32 %v1673, %v2429
    %v2518 = vmul.f32 %v1674, %v2429
    %v2519 = vmul.f32 %v1675, %v2430
    %v2520 = vmul.f32 %v1676, %v2430
    %v2521 = vmul.f32 %v1677, %v2431
    %v2522 = vmul.f32 %v1678, %v2431
    %v2523 = vmul.f32 %v1679, %v2432
    %v2524 = vmul.f32 %v1680, %v2432
    %v2525 = vmul.f32 %v1681, %v2433
    %v2526 = vmul.f32 %v1682, %v2433
    %v2527 = vmul.f32 %v1683, %v2434
    %v2528 = vmul.f32 %v1684, %v2434
    %v2529 = vmul.f32 %v1685, %v2435
    %v2530 = vmul.f32 %v1686, %v2435
    %v2531 = vmul.f32 %v1687, %v2436
    %v2532 = vmul.f32 %v1688, %v2436
    %v2533 = vsel %vm1124, %v2469, 0.0
    %v2534 = vsel %vm1124, %v2471, 0.0
    %v2535 = vadd.f32 %v2533, %v2534
    %v2536 = vsel %vm1124, %v2473, 0.0
    %v2537 = vadd.f32 %v2535, %v2536
    %v2538 = vsel %vm1124, %v2475, 0.0
    %v2539 = vadd.f32 %v2537, %v2538
    %v2540 = vsel %vm1124, %v2477, 0.0
    %v2541 = vadd.f32 %v2539, %v2540
    %v2542 = vsel %vm1124, %v2479, 0.0
    %v2543 = vadd.f32 %v2541, %v2542
    %v2544 = vsel %vm1124, %v2481, 0.0
    %v2545 = vadd.f32 %v2543, %v2544
    %v2546 = vsel %vm1124, %v2483, 0.0
    %v2547 = vadd.f32 %v2545, %v2546
    %v2548 = vsel %vm1124, %v2485, 0.0
    %v2549 = vadd.f32 %v2547, %v2548
    %v2550 = vsel %vm1124, %v2487, 0.0
    %v2551 = vadd.f32 %v2549, %v2550
    %v2552 = vsel %vm1124, %v2489, 0.0
    %v2553 = vadd.f32 %v2551, %v2552
    %v2554 = vsel %vm1124, %v2491, 0.0
    %v2555 = vadd.f32 %v2553, %v2554
    %v2556 = vsel %vm1124, %v2493, 0.0
    %v2557 = vadd.f32 %v2555, %v2556
    %v2558 = vsel %vm1124, %v2495, 0.0
    %v2559 = vadd.f32 %v2557, %v2558
    %v2560 = vsel %vm1124, %v2497, 0.0
    %v2561 = vadd.f32 %v2559, %v2560
    %v2562 = vsel %vm1124, %v2499, 0.0
    %v2563 = vadd.f32 %v2561, %v2562
    %v2564 = vsel %vm1124, %v2470, 0.0
    %v2565 = vsel %vm1124, %v2472, 0.0
    %v2566 = vadd.f32 %v2564, %v2565
    %v2567 = vsel %vm1124, %v2474, 0.0
    %v2568 = vadd.f32 %v2566, %v2567
    %v2569 = vsel %vm1124, %v2476, 0.0
    %v2570 = vadd.f32 %v2568, %v2569
    %v2571 = vsel %vm1124, %v2478, 0.0
    %v2572 = vadd.f32 %v2570, %v2571
    %v2573 = vsel %vm1124, %v2480, 0.0
    %v2574 = vadd.f32 %v2572, %v2573
    %v2575 = vsel %vm1124, %v2482, 0.0
    %v2576 = vadd.f32 %v2574, %v2575
    %v2577 = vsel %vm1124, %v2484, 0.0
    %v2578 = vadd.f32 %v2576, %v2577
    %v2579 = vsel %vm1124, %v2486, 0.0
    %v2580 = vadd.f32 %v2578, %v2579
    %v2581 = vsel %vm1124, %v2488, 0.0
    %v2582 = vadd.f32 %v2580, %v2581
    %v2583 = vsel %vm1124, %v2490, 0.0
    %v2584 = vadd.f32 %v2582, %v2583
    %v2585 = vsel %vm1124, %v2492, 0.0
    %v2586 = vadd.f32 %v2584, %v2585
    %v2587 = vsel %vm1124, %v2494, 0.0
    %v2588 = vadd.f32 %v2586, %v2587
    %v2589 = vsel %vm1124, %v2496, 0.0
    %v2590 = vadd.f32 %v2588, %v2589
    %v2591 = vsel %vm1124, %v2498, 0.0
    %v2592 = vadd.f32 %v2590, %v2591
    %v2593 = vsel %vm1124, %v2500, 0.0
    %v2594 = vadd.f32 %v2592, %v2593
    %v2595 = vsel %vm1124, %v2501, 0.0
    %v2596 = vsel %vm1124, %v2503, 0.0
    %v2597 = vadd.f32 %v2595, %v2596
    %v2598 = vsel %vm1124, %v2505, 0.0
    %v2599 = vadd.f32 %v2597, %v2598
    %v2600 = vsel %vm1124, %v2507, 0.0
    %v2601 = vadd.f32 %v2599, %v2600
    %v2602 = vsel %vm1124, %v2509, 0.0
    %v2603 = vadd.f32 %v2601, %v2602
    %v2604 = vsel %vm1124, %v2511, 0.0
    %v2605 = vadd.f32 %v2603, %v2604
    %v2606 = vsel %vm1124, %v2513, 0.0
    %v2607 = vadd.f32 %v2605, %v2606
    %v2608 = vsel %vm1124, %v2515, 0.0
    %v2609 = vadd.f32 %v2607, %v2608
    %v2610 = vsel %vm1124, %v2517, 0.0
    %v2611 = vadd.f32 %v2609, %v2610
    %v2612 = vsel %vm1124, %v2519, 0.0
    %v2613 = vadd.f32 %v2611, %v2612
    %v2614 = vsel %vm1124, %v2521, 0.0
    %v2615 = vadd.f32 %v2613, %v2614
    %v2616 = vsel %vm1124, %v2523, 0.0
    %v2617 = vadd.f32 %v2615, %v2616
    %v2618 = vsel %vm1124, %v2525, 0.0
    %v2619 = vadd.f32 %v2617, %v2618
    %v2620 = vsel %vm1124, %v2527, 0.0
    %v2621 = vadd.f32 %v2619, %v2620
    %v2622 = vsel %vm1124, %v2529, 0.0
    %v2623 = vadd.f32 %v2621, %v2622
    %v2624 = vsel %vm1124, %v2531, 0.0
    %v2625 = vadd.f32 %v2623, %v2624
    %v2626 = vsel %vm1124, %v2502, 0.0
    %v2627 = vsel %vm1124, %v2504, 0.0
    %v2628 = vadd.f32 %v2626, %v2627
    %v2629 = vsel %vm1124, %v2506, 0.0
    %v2630 = vadd.f32 %v2628, %v2629
    %v2631 = vsel %vm1124, %v2508, 0.0
    %v2632 = vadd.f32 %v2630, %v2631
    %v2633 = vsel %vm1124, %v2510, 0.0
    %v2634 = vadd.f32 %v2632, %v2633
    %v2635 = vsel %vm1124, %v2512, 0.0
    %v2636 = vadd.f32 %v2634, %v2635
    %v2637 = vsel %vm1124, %v2514, 0.0
    %v2638 = vadd.f32 %v2636, %v2637
    %v2639 = vsel %vm1124, %v2516, 0.0
    %v2640 = vadd.f32 %v2638, %v2639
    %v2641 = vsel %vm1124, %v2518, 0.0
    %v2642 = vadd.f32 %v2640, %v2641
    %v2643 = vsel %vm1124, %v2520, 0.0
    %v2644 = vadd.f32 %v2642, %v2643
    %v2645 = vsel %vm1124, %v2522, 0.0
    %v2646 = vadd.f32 %v2644, %v2645
    %v2647 = vsel %vm1124, %v2524, 0.0
    %v2648 = vadd.f32 %v2646, %v2647
    %v2649 = vsel %vm1124, %v2526, 0.0
    %v2650 = vadd.f32 %v2648, %v2649
    %v2651 = vsel %vm1124, %v2528, 0.0
    %v2652 = vadd.f32 %v2650, %v2651
    %v2653 = vsel %vm1124, %v2530, 0.0
    %v2654 = vadd.f32 %v2652, %v2653
    %v2655 = vsel %vm1124, %v2532, 0.0
    %v2656 = vadd.f32 %v2654, %v2655
    %v2657 = vrot.slane %v126, 3
    %s2658 = vtos %v2657
    %v2659 = vstv %s2658
    %v2660 = vmul.f32 %v2659, %v54
    %v2661 = vmul.f32 %v2659, %v55
    %v2662 = vmul.f32 %v2659, %v62
    %v2663 = vmul.f32 %v2659, %v63
    %v2664 = vrot.slane %v129, 3
    %s2665 = vtos %v2664
    %v2666 = vstv %s2665
    %v2667 = vmul.f32 %v2666, %v56
    %v2668 = vmul.f32 %v2666, %v57
    %v2669 = vmul.f32 %v2666, %v64
    %v2670 = vmul.f32 %v2666, %v65
    %v2671 = vadd.f32 %v2660, %v2667
    %v2672 = vadd.f32 %v2661, %v2668
    %v2673 = vadd.f32 %v2662, %v2669
    %v2674 = vadd.f32 %v2663, %v2670
    %v2675 = vrot.slane %v132, 3
    %s2676 = vtos %v2675
    %v2677 = vstv %s2676
    %v2678 = vmul.f32 %v2677, %v58
    %v2679 = vmul.f32 %v2677, %v59
    %v2680 = vmul.f32 %v2677, %v66
    %v2681 = vmul.f32 %v2677, %v67
    %v2682 = vadd.f32 %v2671, %v2678
    %v2683 = vadd.f32 %v2672, %v2679
    %v2684 = vadd.f32 %v2673, %v2680
    %v2685 = vadd.f32 %v2674, %v2681
    %v2686 = vrot.slane %v135, 3
    %s2687 = vtos %v2686
    %v2688 = vstv %s2687
    %v2689 = vmul.f32 %v2688, %v60
    %v2690 = vmul.f32 %v2688, %v61
    %v2691 = vmul.f32 %v2688, %v68
    %v2692 = vmul.f32 %v2688, %v69
    %v2693 = vadd.f32 %v2682, %v2689
    %v2694 = vadd.f32 %v2683, %v2690
    %v2695 = vadd.f32 %v2684, %v2691
    %v2696 = vadd.f32 %v2685, %v2692
    %v2701 = vrot.slane %v2693, 1
    %v2702 = vrot.slane %v2693, 2
    %v2703 = vrot.slane %v2693, 3
    %v2704 = vrot.slane %v2693, 4
    %v2705 = vrot.slane %v2693, 5
    %v2706 = vrot.slane %v2693, 6
    %v2707 = vrot.slane %v2693, 7
    %v2708 = vrot.slane %v2694, 1
    %v2709 = vrot.slane %v2694, 2
    %v2710 = vrot.slane %v2694, 3
    %v2711 = vrot.slane %v2694, 4
    %v2712 = vrot.slane %v2694, 5
    %v2713 = vrot.slane %v2694, 6
    %v2714 = vrot.slane %v2694, 7
    %v2715 = vrot.slane %v2695, 1
    %v2716 = vrot.slane %v2695, 2
    %v2717 = vrot.slane %v2695, 3
    %v2718 = vrot.slane %v2695, 4
    %v2719 = vrot.slane %v2695, 5
    %v2720 = vrot.slane %v2695, 6
    %v2721 = vrot.slane %v2695, 7
    %v2722 = vrot.slane %v2696, 1
    %v2723 = vrot.slane %v2696, 2
    %v2724 = vrot.slane %v2696, 3
    %v2725 = vrot.slane %v2696, 4
    %v2726 = vrot.slane %v2696, 5
    %v2727 = vrot.slane %v2696, 6
    %v2728 = vrot.slane %v2696, 7
    %v2729 = vperm.slane %v2693, 0
    %v2730 = vperm.slane %v2701, 0
    %v2731 = vperm.slane %v2702, 0
    %v2732 = vperm.slane %v2703, 0
    %v2733 = vperm.slane %v2704, 0
    %v2734 = vperm.slane %v2705, 0
    %v2735 = vperm.slane %v2706, 0
    %v2736 = vperm.slane %v2707, 0
    %v2737 = vperm.slane %v2694, 0
    %v2738 = vperm.slane %v2708, 0
    %v2739 = vperm.slane %v2709, 0
    %v2740 = vperm.slane %v2710, 0
    %v2741 = vperm.slane %v2711, 0
    %v2742 = vperm.slane %v2712, 0
    %v2743 = vperm.slane %v2713, 0
    %v2744 = vperm.slane %v2714, 0
    %v2745 = vperm.slane %v2695, 0
    %v2746 = vperm.slane %v2715, 0
    %v2747 = vperm.slane %v2716, 0
    %v2748 = vperm.slane %v2717, 0
    %v2749 = vperm.slane %v2718, 0
    %v2750 = vperm.slane %v2719, 0
    %v2751 = vperm.slane %v2720, 0
    %v2752 = vperm.slane %v2721, 0
    %v2753 = vperm.slane %v2696, 0
    %v2754 = vperm.slane %v2722, 0
    %v2755 = vperm.slane %v2723, 0
    %v2756 = vperm.slane %v2724, 0
    %v2757 = vperm.slane %v2725, 0
    %v2758 = vperm.slane %v2726, 0
    %v2759 = vperm.slane %v2727, 0
    %v2760 = vperm.slane %v2728, 0
    %v2793 = vmul.f32 %v1625, %v2729
    %v2794 = vmul.f32 %v1626, %v2729
    %v2795 = vmul.f32 %v1627, %v2730
    %v2796 = vmul.f32 %v1628, %v2730
    %v2797 = vmul.f32 %v1629, %v2731
    %v2798 = vmul.f32 %v1630, %v2731
    %v2799 = vmul.f32 %v1631, %v2732
    %v2800 = vmul.f32 %v1632, %v2732
    %v2801 = vmul.f32 %v1633, %v2733
    %v2802 = vmul.f32 %v1634, %v2733
    %v2803 = vmul.f32 %v1635, %v2734
    %v2804 = vmul.f32 %v1636, %v2734
    %v2805 = vmul.f32 %v1637, %v2735
    %v2806 = vmul.f32 %v1638, %v2735
    %v2807 = vmul.f32 %v1639, %v2736
    %v2808 = vmul.f32 %v1640, %v2736
    %v2809 = vmul.f32 %v1641, %v2737
    %v2810 = vmul.f32 %v1642, %v2737
    %v2811 = vmul.f32 %v1643, %v2738
    %v2812 = vmul.f32 %v1644, %v2738
    %v2813 = vmul.f32 %v1645, %v2739
    %v2814 = vmul.f32 %v1646, %v2739
    %v2815 = vmul.f32 %v1647, %v2740
    %v2816 = vmul.f32 %v1648, %v2740
    %v2817 = vmul.f32 %v1649, %v2741
    %v2818 = vmul.f32 %v1650, %v2741
    %v2819 = vmul.f32 %v1651, %v2742
    %v2820 = vmul.f32 %v1652, %v2742
    %v2821 = vmul.f32 %v1653, %v2743
    %v2822 = vmul.f32 %v1654, %v2743
    %v2823 = vmul.f32 %v1655, %v2744
    %v2824 = vmul.f32 %v1656, %v2744
    %v2825 = vmul.f32 %v1657, %v2745
    %v2826 = vmul.f32 %v1658, %v2745
    %v2827 = vmul.f32 %v1659, %v2746
    %v2828 = vmul.f32 %v1660, %v2746
    %v2829 = vmul.f32 %v1661, %v2747
    %v2830 = vmul.f32 %v1662, %v2747
    %v2831 = vmul.f32 %v1663, %v2748
    %v2832 = vmul.f32 %v1664, %v2748
    %v2833 = vmul.f32 %v1665, %v2749
    %v2834 = vmul.f32 %v1666, %v2749
    %v2835 = vmul.f32 %v1667, %v2750
    %v2836 = vmul.f32 %v1668, %v2750
    %v2837 = vmul.f32 %v1669, %v2751
    %v2838 = vmul.f32 %v1670, %v2751
    %v2839 = vmul.f32 %v1671, %v2752
    %v2840 = vmul.f32 %v1672, %v2752
    %v2841 = vmul.f32 %v1673, %v2753
    %v2842 = vmul.f32 %v1674, %v2753
    %v2843 = vmul.f32 %v1675, %v2754
    %v2844 = vmul.f32 %v1676, %v2754
    %v2845 = vmul.f32 %v1677, %v2755
    %v2846 = vmul.f32 %v1678, %v2755
    %v2847 = vmul.f32 %v1679, %v2756
    %v2848 = vmul.f32 %v1680, %v2756
    %v2849 = vmul.f32 %v1681, %v2757
    %v2850 = vmul.f32 %v1682, %v2757
    %v2851 = vmul.f32 %v1683, %v2758
    %v2852 = vmul.f32 %v1684, %v2758
    %v2853 = vmul.f32 %v1685, %v2759
    %v2854 = vmul.f32 %v1686, %v2759
    %v2855 = vmul.f32 %v1687, %v2760
    %v2856 = vmul.f32 %v1688, %v2760
    %v2857 = vsel %vm1124, %v2793, 0.0
    %v2858 = vsel %vm1124, %v2795, 0.0
    %v2859 = vadd.f32 %v2857, %v2858
    %v2860 = vsel %vm1124, %v2797, 0.0
    %v2861 = vadd.f32 %v2859, %v2860
    %v2862 = vsel %vm1124, %v2799, 0.0
    %v2863 = vadd.f32 %v2861, %v2862
    %v2864 = vsel %vm1124, %v2801, 0.0
    %v2865 = vadd.f32 %v2863, %v2864
    %v2866 = vsel %vm1124, %v2803, 0.0
    %v2867 = vadd.f32 %v2865, %v2866
    %v2868 = vsel %vm1124, %v2805, 0.0
    %v2869 = vadd.f32 %v2867, %v2868
    %v2870 = vsel %vm1124, %v2807, 0.0
    %v2871 = vadd.f32 %v2869, %v2870
    %v2872 = vsel %vm1124, %v2809, 0.0
    %v2873 = vadd.f32 %v2871, %v2872
    %v2874 = vsel %vm1124, %v2811, 0.0
    %v2875 = vadd.f32 %v2873, %v2874
    %v2876 = vsel %vm1124, %v2813, 0.0
    %v2877 = vadd.f32 %v2875, %v2876
    %v2878 = vsel %vm1124, %v2815, 0.0
    %v2879 = vadd.f32 %v2877, %v2878
    %v2880 = vsel %vm1124, %v2817, 0.0
    %v2881 = vadd.f32 %v2879, %v2880
    %v2882 = vsel %vm1124, %v2819, 0.0
    %v2883 = vadd.f32 %v2881, %v2882
    %v2884 = vsel %vm1124, %v2821, 0.0
    %v2885 = vadd.f32 %v2883, %v2884
    %v2886 = vsel %vm1124, %v2823, 0.0
    %v2887 = vadd.f32 %v2885, %v2886
    %v2888 = vsel %vm1124, %v2794, 0.0
    %v2889 = vsel %vm1124, %v2796, 0.0
    %v2890 = vadd.f32 %v2888, %v2889
    %v2891 = vsel %vm1124, %v2798, 0.0
    %v2892 = vadd.f32 %v2890, %v2891
    %v2893 = vsel %vm1124, %v2800, 0.0
    %v2894 = vadd.f32 %v2892, %v2893
    %v2895 = vsel %vm1124, %v2802, 0.0
    %v2896 = vadd.f32 %v2894, %v2895
    %v2897 = vsel %vm1124, %v2804, 0.0
    %v2898 = vadd.f32 %v2896, %v2897
    %v2899 = vsel %vm1124, %v2806, 0.0
    %v2900 = vadd.f32 %v2898, %v2899
    %v2901 = vsel %vm1124, %v2808, 0.0
    %v2902 = vadd.f32 %v2900, %v2901
    %v2903 = vsel %vm1124, %v2810, 0.0
    %v2904 = vadd.f32 %v2902, %v2903
    %v2905 = vsel %vm1124, %v2812, 0.0
    %v2906 = vadd.f32 %v2904, %v2905
    %v2907 = vsel %vm1124, %v2814, 0.0
    %v2908 = vadd.f32 %v2906, %v2907
    %v2909 = vsel %vm1124, %v2816, 0.0
    %v2910 = vadd.f32 %v2908, %v2909
    %v2911 = vsel %vm1124, %v2818, 0.0
    %v2912 = vadd.f32 %v2910, %v2911
    %v2913 = vsel %vm1124, %v2820, 0.0
    %v2914 = vadd.f32 %v2912, %v2913
    %v2915 = vsel %vm1124, %v2822, 0.0
    %v2916 = vadd.f32 %v2914, %v2915
    %v2917 = vsel %vm1124, %v2824, 0.0
    %v2918 = vadd.f32 %v2916, %v2917
    %v2919 = vsel %vm1124, %v2825, 0.0
    %v2920 = vsel %vm1124, %v2827, 0.0
    %v2921 = vadd.f32 %v2919, %v2920
    %v2922 = vsel %vm1124, %v2829, 0.0
    %v2923 = vadd.f32 %v2921, %v2922
    %v2924 = vsel %vm1124, %v2831, 0.0
    %v2925 = vadd.f32 %v2923, %v2924
    %v2926 = vsel %vm1124, %v2833, 0.0
    %v2927 = vadd.f32 %v2925, %v2926
    %v2928 = vsel %vm1124, %v2835, 0.0
    %v2929 = vadd.f32 %v2927, %v2928
    %v2930 = vsel %vm1124, %v2837, 0.0
    %v2931 = vadd.f32 %v2929, %v2930
    %v2932 = vsel %vm1124, %v2839, 0.0
    %v2933 = vadd.f32 %v2931, %v2932
    %v2934 = vsel %vm1124, %v2841, 0.0
    %v2935 = vadd.f32 %v2933, %v2934
    %v2936 = vsel %vm1124, %v2843, 0.0
    %v2937 = vadd.f32 %v2935, %v2936
    %v2938 = vsel %vm1124, %v2845, 0.0
    %v2939 = vadd.f32 %v2937, %v2938
    %v2940 = vsel %vm1124, %v2847, 0.0
    %v2941 = vadd.f32 %v2939, %v2940
    %v2942 = vsel %vm1124, %v2849, 0.0
    %v2943 = vadd.f32 %v2941, %v2942
    %v2944 = vsel %vm1124, %v2851, 0.0
    %v2945 = vadd.f32 %v2943, %v2944
    %v2946 = vsel %vm1124, %v2853, 0.0
    %v2947 = vadd.f32 %v2945, %v2946
    %v2948 = vsel %vm1124, %v2855, 0.0
    %v2949 = vadd.f32 %v2947, %v2948
    %v2950 = vsel %vm1124, %v2826, 0.0
    %v2951 = vsel %vm1124, %v2828, 0.0
    %v2952 = vadd.f32 %v2950, %v2951
    %v2953 = vsel %vm1124, %v2830, 0.0
    %v2954 = vadd.f32 %v2952, %v2953
    %v2955 = vsel %vm1124, %v2832, 0.0
    %v2956 = vadd.f32 %v2954, %v2955
    %v2957 = vsel %vm1124, %v2834, 0.0
    %v2958 = vadd.f32 %v2956, %v2957
    %v2959 = vsel %vm1124, %v2836, 0.0
    %v2960 = vadd.f32 %v2958, %v2959
    %v2961 = vsel %vm1124, %v2838, 0.0
    %v2962 = vadd.f32 %v2960, %v2961
    %v2963 = vsel %vm1124, %v2840, 0.0
    %v2964 = vadd.f32 %v2962, %v2963
    %v2965 = vsel %vm1124, %v2842, 0.0
    %v2966 = vadd.f32 %v2964, %v2965
    %v2967 = vsel %vm1124, %v2844, 0.0
    %v2968 = vadd.f32 %v2966, %v2967
    %v2969 = vsel %vm1124, %v2846, 0.0
    %v2970 = vadd.f32 %v2968, %v2969
    %v2971 = vsel %vm1124, %v2848, 0.0
    %v2972 = vadd.f32 %v2970, %v2971
    %v2973 = vsel %vm1124, %v2850, 0.0
    %v2974 = vadd.f32 %v2972, %v2973
    %v2975 = vsel %vm1124, %v2852, 0.0
    %v2976 = vadd.f32 %v2974, %v2975
    %v2977 = vsel %vm1124, %v2854, 0.0
    %v2978 = vadd.f32 %v2976, %v2977
    %v2979 = vsel %vm1124, %v2856, 0.0
    %v2980 = vadd.f32 %v2978, %v2979
    %s2981 = vtos %v74
    %v2982 = vstv %s2981
    %v2983 = vadd.f32 %v1915, %v2982
    %v2984 = vadd.f32 %v1946, %v2982
    %v2985 = vadd.f32 %v1977, %v2982
    %v2986 = vadd.f32 %v2008, %v2982
    %2987 = vst.msk [vmem:[#allocation7] sm:$0xff] %vm1124, %v2983
    %2988 = vst.msk [vmem:[#allocation7 + $0x8] sm:$0xff] %vm1124, %v2984
    %2989 = vst.msk [vmem:[#allocation7 + $0x40] sm:$0xff] %vm1124, %v2985
    %2990 = vst.msk [vmem:[#allocation7 + $0x48] sm:$0xff] %vm1124, %v2986
    %2991 = vrot.lane.b32.xlu0 %v74, 127
    %v2992 = vpop.permute.xlu0 %2991
    %s2993 = vtos %v2992
    %v2994 = vstv %s2993
    %v2995 = vadd.f32 %v2239, %v2994
    %v2996 = vadd.f32 %v2270, %v2994
    %v2997 = vadd.f32 %v2301, %v2994
    %v2998 = vadd.f32 %v2332, %v2994
    %s2999 = scalar_lea.vmem [#allocation7], 16
    %3000 = vst.msk [vmem:[%s2999] sm:$0xff] %vm1124, %v2995
    %3001 = vst.msk [vmem:[%s2999 + $0x8] sm:$0xff] %vm1124, %v2996
    %3002 = vst.msk [vmem:[%s2999 + $0x40] sm:$0xff] %vm1124, %v2997
    %3003 = vst.msk [vmem:[%s2999 + $0x48] sm:$0xff] %vm1124, %v2998
    %3004 = vrot.lane.b32.xlu0 %v74, 126
    %v3005 = vpop.permute.xlu0 %3004
    %s3006 = vtos %v3005
    %v3007 = vstv %s3006
    %v3008 = vadd.f32 %v2563, %v3007
    %v3009 = vadd.f32 %v2594, %v3007
    %v3010 = vadd.f32 %v2625, %v3007
    %v3011 = vadd.f32 %v2656, %v3007
    %s3012 = scalar_lea.vmem [#allocation7], 32
    %3013 = vst.msk [vmem:[%s3012] sm:$0xff] %vm1124, %v3008
    %3014 = vst.msk [vmem:[%s3012 + $0x8] sm:$0xff] %vm1124, %v3009
    %3015 = vst.msk [vmem:[%s3012 + $0x40] sm:$0xff] %vm1124, %v3010
    %3016 = vst.msk [vmem:[%s3012 + $0x48] sm:$0xff] %vm1124, %v3011
    %3017 = vrot.lane.b32.xlu0 %v74, 125
    %v3018 = vpop.permute.xlu0 %3017
    %s3019 = vtos %v3018
    %v3020 = vstv %s3019
    %v3021 = vadd.f32 %v2887, %v3020
    %v3022 = vadd.f32 %v2918, %v3020
    %v3023 = vadd.f32 %v2949, %v3020
    %v3024 = vadd.f32 %v2980, %v3020
    %s3025 = scalar_lea.vmem [#allocation7], 48
    %3026 = vst.msk [vmem:[%s3025] sm:$0xff] %vm1124, %v3021
    %3027 = vst.msk [vmem:[%s3025 + $0x8] sm:$0xff] %vm1124, %v3022
    %3028 = vst.msk [vmem:[%s3025 + $0x40] sm:$0xff] %vm1124, %v3023
    %3029 = vst.msk [vmem:[%s3025 + $0x48] sm:$0xff] %vm1124, %v3024
    // Predicated region
    $region34: #{permute_to_from.1} parent=1 // pred_check
      _
    $region35: #{permute_to_from.1} parent=1 // pred_check_branch
      %3031 = sbr.rel (0) target = $region37
    $region36: #{permute_to_from.1} parent=1 // pred_region
      %3033 = vsyncadd [#allocation4], 0
      %s3034 = sshll.u32 [#allocation7], 4
      %s3035 = int_to_ptr.vmem [resolvable:$true] %s3034
      %s3036 = sshll.u32 %s6, 4
      %s3037 = int_to_ptr.hbm [resolvable:$true] %s3036
      %3042 = dma.vmem_to_hbm [thread:$0]  %s3035, 2048, %s3037, [#allocation4], 128, 128, 8
    $region37: #{permute_to_from.1} parent=1 // pred_fallthru
      _
    // Predicated region
    $region38: #{permute_to_from.1} parent=1 // pred_check
      _
    $region39: #{permute_to_from.1} parent=1 // pred_check_branch
      %3044 = sbr.rel (0) target = $region41
    $region40: #{permute_to_from.1} parent=1 // pred_region
      %3046 = dma.done [#allocation4], 2048
    $region41: #{permute_to_from.1} parent=1 // pred_fallthru
      _
    %3047 = vsyncpa [#allocation3], 1
    %3048 = vsyncpa [#allocation6], 1
    %3049 = vsyncpa [#allocation4], 1

</llo_original>
